<compile_context>
chip_gen: v5e
topology: v5e:2x2
jax: 0.10.0
libtpu: 0.0.40
codegen_flags: <defaults>
</compile_context>

<pallas_src>
import jax
import jax.numpy as jnp
from jax.experimental import pallas as pl
from jax.experimental.pallas import tpu as pltpu

# ----- fixed module hyper-parameters ---------------------------------------
E = 100                     # embedding dim / LSTM input dim (real)
EP = 128                    # lane-padded feature dim used inside the kernel
H = 50                      # LSTM hidden size per direction (2*H == E)
GP = 128                    # per-gate lane-aligned block width (i | g | o)
GRID_SIZE = 5
SPLINE_ORDER = 3
NUM_BASES = GRID_SIZE + SPLINE_ORDER          # 8 cubic B-spline basis functions
KAN_IN1, KAN_HID, KAN_OUT = 100, 32, 2
IN1P, HIDP, OUTP = 128, 128, 128               # padded KAN dims (lane-dense output)
LN_EPS = 1e-5

# efficient-kan uniform knots: arange(-k, grid+k+1) * h + grid_min
_KH = 2.0 / GRID_SIZE                          # knot spacing (0.4)
_INV_KH = 1.0 / _KH                            # reciprocal constant (no divides in-kernel)
_KNOT0 = -1.0 - SPLINE_ORDER * _KH             # first knot (-2.2)


def _round_up(n, m):
    return ((n + m - 1) // m) * m


def _bspline_bases(x):
    """Closed-form uniform cubic B-spline bases (== Cox-de Boor on these knots).

    Knots are uniform, so for x in knot interval m = floor((x - knot0)/h) with
    local offset u, the only nonzero cubic bases are j = m-3..m and they take
    the four standard blending-polynomial values.  Inputs at/above the last
    knot or below the first knot get all-zero bases, matching efficient-KAN's
    half-open degree-0 indicators.  x: (B, IN) f32 -> list of 8 (B, IN) f32.
    """
    s = (x - _KNOT0) * _INV_KH
    m = jnp.floor(s)
    u = s - m
    u2 = u * u
    u3 = u2 * u
    omu = 1.0 - u
    p0 = omu * omu * omu * (1.0 / 6.0)                       # basis j = m - 3
    p1 = 0.5 * u3 - u2 + (2.0 / 3.0)                         # basis j = m - 2
    p2 = (-0.5) * u3 + 0.5 * u2 + 0.5 * u + (1.0 / 6.0)      # basis j = m - 1
    p3 = u3 * (1.0 / 6.0)                                    # basis j = m
    zero = jnp.zeros_like(s)

    def pick(c, p):
        return jnp.where(m == jnp.float32(c), p, zero)

    bases = []
    for j in range(NUM_BASES):
        bases.append(pick(j, p3) + pick(j + 1, p2)
                     + pick(j + 2, p1) + pick(j + 3, p0))
    return bases


def model_kernel(x_ref,
                 w1_ref, b1_ref, w2_ref, b2_ref,
                 gamma_ref, beta_ref,
                 k1b_ref, k1s_ref, k2b_ref, k2s_ref,
                 out_ref):
    f32 = jnp.float32
    bf16 = jnp.bfloat16

    x = x_ref[...]                                    # (TB, EP) f32, lanes 100:128 are zero

    # ---- 2-layer bidirectional LSTM over a length-1 sequence (h0 = c0 = 0) ----
    # Both directions fused into one matmul; gate blocks are 128-lane aligned:
    #   cols [0:128)=i(fwd|bwd|pad)  [128:256)=g  [256:384)=o ; forget gate dropped (f*c0==0).
    # Pad lanes stay exactly 0 because gg = tanh(0) = 0.
    def lstm_layer(inp, w_ref, b_ref):
        pre = jnp.dot(inp.astype(bf16), w_ref[...],
                      preferred_element_type=f32) + b_ref[...]       # (TB, 384)
        gi = jax.nn.sigmoid(pre[:, 0:GP])
        gg = jnp.tanh(pre[:, GP:2 * GP])
        go = jnp.sigmoid(pre[:, 2 * GP:3 * GP]) if False else jax.nn.sigmoid(pre[:, 2 * GP:3 * GP])
        return go * jnp.tanh(gi * gg)                                # (TB, 128) = [h_f|h_b|0]

    l1 = lstm_layer(x, w1_ref, b1_ref)
    l2 = lstm_layer(l1, w2_ref, b2_ref)
    out1 = x + l2                                                    # residual, pad lanes 0

    # ---- attention over the length-1 sequence: softmax == 1 exactly, dropout = id (eval)
    out2 = 2.0 * out1

    # ---- LayerNorm over the real E=100 lanes (pad lanes of out2 are exactly zero)
    lane = jax.lax.broadcasted_iota(jnp.int32, out2.shape, 1)
    mask = lane < E
    mean = jnp.sum(out2, axis=-1, keepdims=True) * (1.0 / E)
    cen = jnp.where(mask, out2 - mean, 0.0)
    var = jnp.sum(cen * cen, axis=-1, keepdims=True) * (1.0 / E)
    ln = cen * jax.lax.rsqrt(var + LN_EPS) * gamma_ref[...] + beta_ref[...]

    # ---- efficient-KAN: SiLU base path + single fused B-spline matmul per layer ----
    def kan_layer(xin, base_ref, spline_ref):
        base = jnp.dot(jax.nn.silu(xin).astype(bf16), base_ref[...],
                       preferred_element_type=f32)
        # per-basis bf16 cast BEFORE concat -> half-size (TB, 8*128) buffer
        bases = jnp.concatenate([b.astype(bf16) for b in _bspline_bases(xin)],
                                axis=-1)                             # (TB, 8*IN_pad) bf16
        spl = jnp.dot(bases, spline_ref[...], preferred_element_type=f32)
        return base + spl

    h1 = kan_layer(ln, k1b_ref, k1s_ref)                             # (TB, 128), cols 32:128 == 0
    out_ref[...] = kan_layer(h1, k2b_ref, k2s_ref)                   # (TB, 128), cols 2:128 == 0


def _batch_tile_cap():
    """256 on v6e/v7x (256x256 MXU, bf16 VALU); 128 on older chips (e.g. v5e)."""
    try:
        kind = jax.devices()[0].device_kind.lower()
    except Exception:
        return 128
    return 256 if ("v6" in kind or "v7" in kind) else 128


def model_forward(x_ids, params):
    """x_ids: (B, S) int32 token ids. Returns (B, 2) float32."""
    B = x_ids.shape[0]

    # Embedding gather + sum over seq in plain-JAX glue (no vocab-sized operand
    # ever reaches the kernel, so VMEM use is independent of vocab size).
    x_sum = jnp.take(params["emb"], x_ids, axis=0).sum(axis=1)       # (B, E) f32
    x_sum = jnp.pad(x_sum, ((0, 0), (0, EP - E)))                    # lane-pad 100 -> 128

    TB = min(_batch_tile_cap(), _round_up(B, 8))                     # batch tile
    B_pad = _round_up(B, TB)
    if B_pad != B:
        x_sum = jnp.pad(x_sum, ((0, B_pad - B), (0, 0)))

    weights = [params[k] for k in ("w1", "b1", "w2", "b2", "gamma", "beta",
                                   "k1b", "k1s", "k2b", "k2s")]

    # Weights are tiny (<1 MiB total) and their index_map is constant, so they
    # stay VMEM-resident across the grid; only the x tile / output are streamed.
    in_specs = ([pl.BlockSpec((TB, EP), lambda i: (i, 0))] +
                [pl.BlockSpec(w.shape, lambda i: (0, 0)) for w in weights])
    out_spec = pl.BlockSpec((TB, OUTP), lambda i: (i, 0))             # lane-dense output

    out = pl.pallas_call(
        model_kernel,
        out_shape=jax.ShapeDtypeStruct((B_pad, OUTP), jnp.float32),
        grid=(B_pad // TB,),
        in_specs=in_specs,
        out_specs=out_spec,
        compiler_params=pltpu.CompilerParams(
            dimension_semantics=("parallel",)),
    )(x_sum, *weights)
    return out[:B, :KAN_OUT]


def init_params(key, vocab):
    ks = jax.random.split(key, 10)

    def nrm(k, shape, scale=0.1):
        return scale * jax.random.normal(k, shape, dtype=jnp.float32)

    emb = jax.random.normal(ks[0], (vocab, E), dtype=jnp.float32)
    emb = emb.at[vocab - 1].set(0.0)                      # padding_idx row is zero

    def pack_lstm_layer(kf, kb, in_dim):
        """Fuse fwd/bwd directions + drop forget gate + lane-align gate blocks."""
        def one_dir(k):
            k1, k2, k3 = jax.random.split(k, 3)
            w_ih = nrm(k1, (4 * H, in_dim))               # torch gate order: i, f, g, o
            b = nrm(k2, (4 * H,)) + nrm(k3, (4 * H,))     # b_ih + b_hh (h0 == 0)
            return ((w_ih[0:H], w_ih[2 * H:3 * H], w_ih[3 * H:4 * H]),
                    (b[0:H], b[2 * H:3 * H], b[3 * H:4 * H]))
        (wf, bfw) = one_dir(kf)
        (wb, bbw) = one_dir(kb)
        W = jnp.zeros((EP, 3 * GP), jnp.float32)
        Bv = jnp.zeros((1, 3 * GP), jnp.float32)
        for g in range(3):
            W = W.at[:in_dim, g * GP:g * GP + H].set(wf[g].T)
            W = W.at[:in_dim, g * GP + H:g * GP + 2 * H].set(wb[g].T)
            Bv = Bv.at[0, g * GP:g * GP + H].set(bfw[g])
            Bv = Bv.at[0, g * GP + H:g * GP + 2 * H].set(bbw[g])
        return W.astype(jnp.bfloat16), Bv

    w1, b1 = pack_lstm_layer(ks[1], ks[2], E)             # layer-1 input dim = 100
    w2, b2 = pack_lstm_layer(ks[3], ks[4], 2 * H)         # layer-2 input dim = 2*H = 100

    gamma = jnp.zeros((1, EP), jnp.float32).at[0, :E].set(1.0)
    beta = jnp.zeros((1, EP), jnp.float32)

    # KAN weights (spline scaler folded into the spline weight; synthetic init).
    # Spline weights are zero-padded to (8, IN_pad, OUT_pad) and reshaped to a
    # single (8*IN_pad, OUT_pad) matrix -> one fused spline matmul per layer.
    # Zero pad rows/cols annihilate contributions from padded lanes.
    def pad2(w, rows, cols):
        return jnp.zeros((rows, cols), jnp.float32).at[:w.shape[0], :w.shape[1]].set(w)

    k1b = pad2(nrm(ks[5], (KAN_IN1, KAN_HID)), IN1P, HIDP).astype(jnp.bfloat16)
    k1s_raw = nrm(ks[6], (NUM_BASES, KAN_IN1, KAN_HID), scale=0.05)
    k1s = (jnp.zeros((NUM_BASES, IN1P, HIDP), jnp.float32)
           .at[:, :KAN_IN1, :KAN_HID].set(k1s_raw)
           .reshape(NUM_BASES * IN1P, HIDP).astype(jnp.bfloat16))

    k2b = pad2(nrm(ks[7], (KAN_HID, KAN_OUT)), HIDP, OUTP).astype(jnp.bfloat16)
    k2s_raw = nrm(ks[8], (NUM_BASES, KAN_HID, KAN_OUT), scale=0.05)
    k2s = (jnp.zeros((NUM_BASES, HIDP, OUTP), jnp.float32)
           .at[:, :KAN_HID, :KAN_OUT].set(k2s_raw)
           .reshape(NUM_BASES * HIDP, OUTP).astype(jnp.bfloat16))

    return dict(emb=emb, w1=w1, b1=b1, w2=w2, b2=b2,
                gamma=gamma, beta=beta,
                k1b=k1b, k1s=k1s, k2b=k2b, k2s=k2s)


if __name__ == "__main__":
    key = jax.random.PRNGKey(0)
    k_param, k_x = jax.random.split(key)

    B, S, V = 2, 8, 32                     # small shapes; embed dim fixed at 100 by module
    params = init_params(k_param, V)
    x_ids = jax.random.randint(k_x, (B, S), 0, V, dtype=jnp.int32)

    out = jax.block_until_ready(model_forward(x_ids, params))

    assert out.shape == (B, KAN_OUT), out.shape
    assert bool(jnp.all(jnp.isfinite(out)))
    print("KERNEL_OK")
</pallas_src>

<mosaic_0001>
module attributes {stable_mosaic.version = 11 : i64} {
  func.func @model_kernel(%arg0: i32, %arg1: memref<8x128xf32, #tpu.memory_space<vmem>>, %arg2: memref<128x384xbf16, #tpu.memory_space<vmem>>, %arg3: memref<1x384xf32, #tpu.memory_space<vmem>>, %arg4: memref<128x384xbf16, #tpu.memory_space<vmem>>, %arg5: memref<1x384xf32, #tpu.memory_space<vmem>>, %arg6: memref<1x128xf32, #tpu.memory_space<vmem>>, %arg7: memref<1x128xf32, #tpu.memory_space<vmem>>, %arg8: memref<128x128xbf16, #tpu.memory_space<vmem>>, %arg9: memref<1024x128xbf16, #tpu.memory_space<vmem>>, %arg10: memref<128x128xbf16, #tpu.memory_space<vmem>>, %arg11: memref<1024x128xbf16, #tpu.memory_space<vmem>>, %arg12: memref<8x128xf32, #tpu.memory_space<vmem>>) attributes {dimension_semantics = [#tpu.dimension_semantics<parallel>], iteration_bounds = array<i64: 1>, scalar_prefetch = 0 : i64, scratch_operands = 0 : i64, tpu.core_type = #tpu.core_type<tc>, window_params = [{transform_indices = @transform_0, window_bounds = array<i64: 8, 128>}, {pipeline_mode = #tpu.pipeline_mode<synchronous>, transform_indices = @transform_1, window_bounds = array<i64: 128, 384>}, {pipeline_mode = #tpu.pipeline_mode<synchronous>, transform_indices = @transform_2, window_bounds = array<i64: 1, 384>}, {pipeline_mode = #tpu.pipeline_mode<synchronous>, transform_indices = @transform_3, window_bounds = array<i64: 128, 384>}, {pipeline_mode = #tpu.pipeline_mode<synchronous>, transform_indices = @transform_4, window_bounds = array<i64: 1, 384>}, {pipeline_mode = #tpu.pipeline_mode<synchronous>, transform_indices = @transform_5, window_bounds = array<i64: 1, 128>}, {pipeline_mode = #tpu.pipeline_mode<synchronous>, transform_indices = @transform_6, window_bounds = array<i64: 1, 128>}, {pipeline_mode = #tpu.pipeline_mode<synchronous>, transform_indices = @transform_7, window_bounds = array<i64: 128, 128>}, {pipeline_mode = #tpu.pipeline_mode<synchronous>, transform_indices = @transform_8, window_bounds = array<i64: 1024, 128>}, {pipeline_mode = #tpu.pipeline_mode<synchronous>, transform_indices = @transform_9, window_bounds = array<i64: 128, 128>}, {pipeline_mode = #tpu.pipeline_mode<synchronous>, transform_indices = @transform_10, window_bounds = array<i64: 1024, 128>}, {transform_indices = @transform_11, window_bounds = array<i64: 8, 128>}]} {
    %c0 = arith.constant 0 : index
    %c0_0 = arith.constant 0 : index
    %0 = vector.load %arg1[%c0, %c0_0] : memref<8x128xf32, #tpu.memory_space<vmem>>, vector<8x128xf32>
    %1 = arith.truncf %0 : vector<8x128xf32> to vector<8x128xbf16>
    %c0_1 = arith.constant 0 : index
    %c0_2 = arith.constant 0 : index
    %2 = vector.load %arg2[%c0_1, %c0_2] : memref<128x384xbf16, #tpu.memory_space<vmem>>, vector<128x384xbf16>
    %cst = arith.constant dense<0.000000e+00> : vector<8x384xf32>
    %3 = tpu.matmul %1, %2, %cst {dimension_numbers = #tpu.dot_dimension_numbers<[1], [0], [0], [1], [0, 0, 1, 1], [], []>} : vector<8x128xbf16>, vector<128x384xbf16>, vector<8x384xf32> -> vector<8x384xf32>
    %c0_3 = arith.constant 0 : index
    %c0_4 = arith.constant 0 : index
    %4 = vector.load %arg3[%c0_3, %c0_4] : memref<1x384xf32, #tpu.memory_space<vmem>>, vector<1x384xf32>
    %5 = vector.broadcast %4 : vector<1x384xf32> to vector<8x384xf32>
    %6 = arith.addf %3, %5 : vector<8x384xf32>
    %7 = vector.extract_strided_slice %6 {offsets = [0, 0], sizes = [8, 128], strides = [1, 1]} : vector<8x384xf32> to vector<8x128xf32>
    %8 = arith.negf %7 : vector<8x128xf32>
    %9 = math.exp %8 : vector<8x128xf32>
    %cst_5 = arith.constant 1.000000e+00 : f32
    %10 = vector.broadcast %cst_5 : f32 to vector<8x128xf32>
    %11 = arith.addf %10, %9 : vector<8x128xf32>
    %12 = arith.divf %10, %11 : vector<8x128xf32>
    %13 = vector.extract_strided_slice %6 {offsets = [0, 128], sizes = [8, 128], strides = [1, 1]} : vector<8x384xf32> to vector<8x128xf32>
    %14 = math.tanh %13 : vector<8x128xf32>
    %15 = vector.extract_strided_slice %6 {offsets = [0, 256], sizes = [8, 128], strides = [1, 1]} : vector<8x384xf32> to vector<8x128xf32>
    %16 = arith.negf %15 : vector<8x128xf32>
    %17 = math.exp %16 : vector<8x128xf32>
    %cst_6 = arith.constant 1.000000e+00 : f32
    %18 = vector.broadcast %cst_6 : f32 to vector<8x128xf32>
    %19 = arith.addf %18, %17 : vector<8x128xf32>
    %20 = arith.divf %18, %19 : vector<8x128xf32>
    %21 = arith.mulf %12, %14 : vector<8x128xf32>
    %22 = math.tanh %21 : vector<8x128xf32>
    %23 = arith.mulf %20, %22 : vector<8x128xf32>
    %24 = arith.truncf %23 : vector<8x128xf32> to vector<8x128xbf16>
    %c0_7 = arith.constant 0 : index
    %c0_8 = arith.constant 0 : index
    %25 = vector.load %arg4[%c0_7, %c0_8] : memref<128x384xbf16, #tpu.memory_space<vmem>>, vector<128x384xbf16>
    %cst_9 = arith.constant dense<0.000000e+00> : vector<8x384xf32>
    %26 = tpu.matmul %24, %25, %cst_9 {dimension_numbers = #tpu.dot_dimension_numbers<[1], [0], [0], [1], [0, 0, 1, 1], [], []>} : vector<8x128xbf16>, vector<128x384xbf16>, vector<8x384xf32> -> vector<8x384xf32>
    %c0_10 = arith.constant 0 : index
    %c0_11 = arith.constant 0 : index
    %27 = vector.load %arg5[%c0_10, %c0_11] : memref<1x384xf32, #tpu.memory_space<vmem>>, vector<1x384xf32>
    %28 = vector.broadcast %27 : vector<1x384xf32> to vector<8x384xf32>
    %29 = arith.addf %26, %28 : vector<8x384xf32>
    %30 = vector.extract_strided_slice %29 {offsets = [0, 0], sizes = [8, 128], strides = [1, 1]} : vector<8x384xf32> to vector<8x128xf32>
    %31 = arith.negf %30 : vector<8x128xf32>
    %32 = math.exp %31 : vector<8x128xf32>
    %cst_12 = arith.constant 1.000000e+00 : f32
    %33 = vector.broadcast %cst_12 : f32 to vector<8x128xf32>
    %34 = arith.addf %33, %32 : vector<8x128xf32>
    %35 = arith.divf %33, %34 : vector<8x128xf32>
    %36 = vector.extract_strided_slice %29 {offsets = [0, 128], sizes = [8, 128], strides = [1, 1]} : vector<8x384xf32> to vector<8x128xf32>
    %37 = math.tanh %36 : vector<8x128xf32>
    %38 = vector.extract_strided_slice %29 {offsets = [0, 256], sizes = [8, 128], strides = [1, 1]} : vector<8x384xf32> to vector<8x128xf32>
    %39 = arith.negf %38 : vector<8x128xf32>
    %40 = math.exp %39 : vector<8x128xf32>
    %cst_13 = arith.constant 1.000000e+00 : f32
    %41 = vector.broadcast %cst_13 : f32 to vector<8x128xf32>
    %42 = arith.addf %41, %40 : vector<8x128xf32>
    %43 = arith.divf %41, %42 : vector<8x128xf32>
    %44 = arith.mulf %35, %37 : vector<8x128xf32>
    %45 = math.tanh %44 : vector<8x128xf32>
    %46 = arith.mulf %43, %45 : vector<8x128xf32>
    %47 = arith.addf %0, %46 : vector<8x128xf32>
    %cst_14 = arith.constant 2.000000e+00 : f32
    %48 = vector.broadcast %cst_14 : f32 to vector<8x128xf32>
    %49 = arith.mulf %48, %47 : vector<8x128xf32>
    %50 = tpu.iota {dimensions = array<i32: 1>} : vector<8x128xi32>
    %c100_i32 = arith.constant 100 : i32
    %51 = vector.broadcast %c100_i32 : i32 to vector<8x128xi32>
    %52 = arith.cmpi slt, %50, %51 : vector<8x128xi32>
    %cst_15 = arith.constant dense<0.000000e+00> : vector<8xf32>
    %53 = vector.multi_reduction <add>, %49, %cst_15 [1] : vector<8x128xf32> to vector<8xf32>
    %54 = vector.shape_cast %53 : vector<8xf32> to vector<8x1xf32>
    %cst_16 = arith.constant 0.00999999977 : f32
    %55 = vector.broadcast %cst_16 : f32 to vector<8x1xf32>
    %56 = arith.mulf %54, %55 : vector<8x1xf32>
    %57 = vector.broadcast %56 : vector<8x1xf32> to vector<8x128xf32>
    %58 = arith.subf %49, %57 : vector<8x128xf32>
    %cst_17 = arith.constant 0.000000e+00 : f32
    %59 = vector.broadcast %cst_17 : f32 to vector<8x128xf32>
    %60 = arith.select %52, %58, %59 : vector<8x128xi1>, vector<8x128xf32>
    %61 = arith.mulf %60, %60 : vector<8x128xf32>
    %cst_18 = arith.constant dense<0.000000e+00> : vector<8xf32>
    %62 = vector.multi_reduction <add>, %61, %cst_18 [1] : vector<8x128xf32> to vector<8xf32>
    %63 = vector.shape_cast %62 : vector<8xf32> to vector<8x1xf32>
    %cst_19 = arith.constant 0.00999999977 : f32
    %64 = vector.broadcast %cst_19 : f32 to vector<8x1xf32>
    %65 = arith.mulf %63, %64 : vector<8x1xf32>
    %cst_20 = arith.constant 9.99999974E-6 : f32
    %66 = vector.broadcast %cst_20 : f32 to vector<8x1xf32>
    %67 = arith.addf %65, %66 : vector<8x1xf32>
    %68 = math.rsqrt %67 : vector<8x1xf32>
    %69 = vector.broadcast %68 : vector<8x1xf32> to vector<8x128xf32>
    %70 = arith.mulf %60, %69 : vector<8x128xf32>
    %c0_21 = arith.constant 0 : index
    %c0_22 = arith.constant 0 : index
    %71 = vector.load %arg6[%c0_21, %c0_22] : memref<1x128xf32, #tpu.memory_space<vmem>>, vector<1x128xf32>
    %72 = vector.broadcast %71 : vector<1x128xf32> to vector<8x128xf32>
    %73 = arith.mulf %70, %72 : vector<8x128xf32>
    %c0_23 = arith.constant 0 : index
    %c0_24 = arith.constant 0 : index
    %74 = vector.load %arg7[%c0_23, %c0_24] : memref<1x128xf32, #tpu.memory_space<vmem>>, vector<1x128xf32>
    %75 = vector.broadcast %74 : vector<1x128xf32> to vector<8x128xf32>
    %76 = arith.addf %73, %75 : vector<8x128xf32>
    %77 = arith.negf %76 : vector<8x128xf32>
    %78 = math.exp %77 : vector<8x128xf32>
    %cst_25 = arith.constant 1.000000e+00 : f32
    %79 = vector.broadcast %cst_25 : f32 to vector<8x128xf32>
    %80 = arith.addf %79, %78 : vector<8x128xf32>
    %81 = arith.divf %79, %80 : vector<8x128xf32>
    %82 = arith.mulf %76, %81 : vector<8x128xf32>
    %83 = arith.truncf %82 : vector<8x128xf32> to vector<8x128xbf16>
    %c0_26 = arith.constant 0 : index
    %c0_27 = arith.constant 0 : index
    %84 = vector.load %arg8[%c0_26, %c0_27] : memref<128x128xbf16, #tpu.memory_space<vmem>>, vector<128x128xbf16>
    %cst_28 = arith.constant dense<0.000000e+00> : vector<8x128xf32>
    %85 = tpu.matmul %83, %84, %cst_28 {dimension_numbers = #tpu.dot_dimension_numbers<[1], [0], [0], [1], [0, 0, 1, 1], [], []>} : vector<8x128xbf16>, vector<128x128xbf16>, vector<8x128xf32> -> vector<8x128xf32>
    %cst_29 = arith.constant -2.200000e+00 : f32
    %86 = vector.broadcast %cst_29 : f32 to vector<8x128xf32>
    %87 = arith.subf %76, %86 : vector<8x128xf32>
    %cst_30 = arith.constant 2.500000e+00 : f32
    %88 = vector.broadcast %cst_30 : f32 to vector<8x128xf32>
    %89 = arith.mulf %87, %88 : vector<8x128xf32>
    %90 = math.floor %89 : vector<8x128xf32>
    %91 = arith.subf %89, %90 : vector<8x128xf32>
    %92 = arith.mulf %91, %91 : vector<8x128xf32>
    %93 = arith.mulf %92, %91 : vector<8x128xf32>
    %cst_31 = arith.constant 1.000000e+00 : f32
    %94 = vector.broadcast %cst_31 : f32 to vector<8x128xf32>
    %95 = arith.subf %94, %91 : vector<8x128xf32>
    %96 = arith.mulf %95, %95 : vector<8x128xf32>
    %97 = arith.mulf %96, %95 : vector<8x128xf32>
    %cst_32 = arith.constant 0.166666672 : f32
    %98 = vector.broadcast %cst_32 : f32 to vector<8x128xf32>
    %99 = arith.mulf %97, %98 : vector<8x128xf32>
    %cst_33 = arith.constant 5.000000e-01 : f32
    %100 = vector.broadcast %cst_33 : f32 to vector<8x128xf32>
    %101 = arith.mulf %100, %93 : vector<8x128xf32>
    %102 = arith.subf %101, %92 : vector<8x128xf32>
    %cst_34 = arith.constant 0.666666686 : f32
    %103 = vector.broadcast %cst_34 : f32 to vector<8x128xf32>
    %104 = arith.addf %102, %103 : vector<8x128xf32>
    %cst_35 = arith.constant -5.000000e-01 : f32
    %105 = vector.broadcast %cst_35 : f32 to vector<8x128xf32>
    %106 = arith.mulf %105, %93 : vector<8x128xf32>
    %cst_36 = arith.constant 5.000000e-01 : f32
    %107 = vector.broadcast %cst_36 : f32 to vector<8x128xf32>
    %108 = arith.mulf %107, %92 : vector<8x128xf32>
    %109 = arith.addf %106, %108 : vector<8x128xf32>
    %cst_37 = arith.constant 5.000000e-01 : f32
    %110 = vector.broadcast %cst_37 : f32 to vector<8x128xf32>
    %111 = arith.mulf %110, %91 : vector<8x128xf32>
    %112 = arith.addf %109, %111 : vector<8x128xf32>
    %cst_38 = arith.constant 0.166666672 : f32
    %113 = vector.broadcast %cst_38 : f32 to vector<8x128xf32>
    %114 = arith.addf %112, %113 : vector<8x128xf32>
    %cst_39 = arith.constant 0.166666672 : f32
    %115 = vector.broadcast %cst_39 : f32 to vector<8x128xf32>
    %116 = arith.mulf %93, %115 : vector<8x128xf32>
    %cst_40 = arith.constant 0.000000e+00 : f32
    %117 = vector.broadcast %cst_40 : f32 to vector<8x128xf32>
    %cst_41 = arith.constant 0.000000e+00 : f32
    %118 = vector.broadcast %cst_41 : f32 to vector<8x128xf32>
    %119 = arith.cmpf oeq, %90, %118 : vector<8x128xf32>
    %120 = arith.select %119, %116, %117 : vector<8x128xi1>, vector<8x128xf32>
    %cst_42 = arith.constant 1.000000e+00 : f32
    %121 = vector.broadcast %cst_42 : f32 to vector<8x128xf32>
    %122 = arith.cmpf oeq, %90, %121 : vector<8x128xf32>
    %123 = arith.select %122, %114, %117 : vector<8x128xi1>, vector<8x128xf32>
    %124 = arith.addf %120, %123 : vector<8x128xf32>
    %cst_43 = arith.constant 2.000000e+00 : f32
    %125 = vector.broadcast %cst_43 : f32 to vector<8x128xf32>
    %126 = arith.cmpf oeq, %90, %125 : vector<8x128xf32>
    %127 = arith.select %126, %104, %117 : vector<8x128xi1>, vector<8x128xf32>
    %128 = arith.addf %124, %127 : vector<8x128xf32>
    %cst_44 = arith.constant 3.000000e+00 : f32
    %129 = vector.broadcast %cst_44 : f32 to vector<8x128xf32>
    %130 = arith.cmpf oeq, %90, %129 : vector<8x128xf32>
    %131 = arith.select %130, %99, %117 : vector<8x128xi1>, vector<8x128xf32>
    %132 = arith.addf %128, %131 : vector<8x128xf32>
    %cst_45 = arith.constant 1.000000e+00 : f32
    %133 = vector.broadcast %cst_45 : f32 to vector<8x128xf32>
    %134 = arith.cmpf oeq, %90, %133 : vector<8x128xf32>
    %135 = arith.select %134, %116, %117 : vector<8x128xi1>, vector<8x128xf32>
    %cst_46 = arith.constant 2.000000e+00 : f32
    %136 = vector.broadcast %cst_46 : f32 to vector<8x128xf32>
    %137 = arith.cmpf oeq, %90, %136 : vector<8x128xf32>
    %138 = arith.select %137, %114, %117 : vector<8x128xi1>, vector<8x128xf32>
    %139 = arith.addf %135, %138 : vector<8x128xf32>
    %cst_47 = arith.constant 3.000000e+00 : f32
    %140 = vector.broadcast %cst_47 : f32 to vector<8x128xf32>
    %141 = arith.cmpf oeq, %90, %140 : vector<8x128xf32>
    %142 = arith.select %141, %104, %117 : vector<8x128xi1>, vector<8x128xf32>
    %143 = arith.addf %139, %142 : vector<8x128xf32>
    %cst_48 = arith.constant 4.000000e+00 : f32
    %144 = vector.broadcast %cst_48 : f32 to vector<8x128xf32>
    %145 = arith.cmpf oeq, %90, %144 : vector<8x128xf32>
    %146 = arith.select %145, %99, %117 : vector<8x128xi1>, vector<8x128xf32>
    %147 = arith.addf %143, %146 : vector<8x128xf32>
    %cst_49 = arith.constant 2.000000e+00 : f32
    %148 = vector.broadcast %cst_49 : f32 to vector<8x128xf32>
    %149 = arith.cmpf oeq, %90, %148 : vector<8x128xf32>
    %150 = arith.select %149, %116, %117 : vector<8x128xi1>, vector<8x128xf32>
    %cst_50 = arith.constant 3.000000e+00 : f32
    %151 = vector.broadcast %cst_50 : f32 to vector<8x128xf32>
    %152 = arith.cmpf oeq, %90, %151 : vector<8x128xf32>
    %153 = arith.select %152, %114, %117 : vector<8x128xi1>, vector<8x128xf32>
    %154 = arith.addf %150, %153 : vector<8x128xf32>
    %cst_51 = arith.constant 4.000000e+00 : f32
    %155 = vector.broadcast %cst_51 : f32 to vector<8x128xf32>
    %156 = arith.cmpf oeq, %90, %155 : vector<8x128xf32>
    %157 = arith.select %156, %104, %117 : vector<8x128xi1>, vector<8x128xf32>
    %158 = arith.addf %154, %157 : vector<8x128xf32>
    %cst_52 = arith.constant 5.000000e+00 : f32
    %159 = vector.broadcast %cst_52 : f32 to vector<8x128xf32>
    %160 = arith.cmpf oeq, %90, %159 : vector<8x128xf32>
    %161 = arith.select %160, %99, %117 : vector<8x128xi1>, vector<8x128xf32>
    %162 = arith.addf %158, %161 : vector<8x128xf32>
    %cst_53 = arith.constant 3.000000e+00 : f32
    %163 = vector.broadcast %cst_53 : f32 to vector<8x128xf32>
    %164 = arith.cmpf oeq, %90, %163 : vector<8x128xf32>
    %165 = arith.select %164, %116, %117 : vector<8x128xi1>, vector<8x128xf32>
    %cst_54 = arith.constant 4.000000e+00 : f32
    %166 = vector.broadcast %cst_54 : f32 to vector<8x128xf32>
    %167 = arith.cmpf oeq, %90, %166 : vector<8x128xf32>
    %168 = arith.select %167, %114, %117 : vector<8x128xi1>, vector<8x128xf32>
    %169 = arith.addf %165, %168 : vector<8x128xf32>
    %cst_55 = arith.constant 5.000000e+00 : f32
    %170 = vector.broadcast %cst_55 : f32 to vector<8x128xf32>
    %171 = arith.cmpf oeq, %90, %170 : vector<8x128xf32>
    %172 = arith.select %171, %104, %117 : vector<8x128xi1>, vector<8x128xf32>
    %173 = arith.addf %169, %172 : vector<8x128xf32>
    %cst_56 = arith.constant 6.000000e+00 : f32
    %174 = vector.broadcast %cst_56 : f32 to vector<8x128xf32>
    %175 = arith.cmpf oeq, %90, %174 : vector<8x128xf32>
    %176 = arith.select %175, %99, %117 : vector<8x128xi1>, vector<8x128xf32>
    %177 = arith.addf %173, %176 : vector<8x128xf32>
    %cst_57 = arith.constant 4.000000e+00 : f32
    %178 = vector.broadcast %cst_57 : f32 to vector<8x128xf32>
    %179 = arith.cmpf oeq, %90, %178 : vector<8x128xf32>
    %180 = arith.select %179, %116, %117 : vector<8x128xi1>, vector<8x128xf32>
    %cst_58 = arith.constant 5.000000e+00 : f32
    %181 = vector.broadcast %cst_58 : f32 to vector<8x128xf32>
    %182 = arith.cmpf oeq, %90, %181 : vector<8x128xf32>
    %183 = arith.select %182, %114, %117 : vector<8x128xi1>, vector<8x128xf32>
    %184 = arith.addf %180, %183 : vector<8x128xf32>
    %cst_59 = arith.constant 6.000000e+00 : f32
    %185 = vector.broadcast %cst_59 : f32 to vector<8x128xf32>
    %186 = arith.cmpf oeq, %90, %185 : vector<8x128xf32>
    %187 = arith.select %186, %104, %117 : vector<8x128xi1>, vector<8x128xf32>
    %188 = arith.addf %184, %187 : vector<8x128xf32>
    %cst_60 = arith.constant 7.000000e+00 : f32
    %189 = vector.broadcast %cst_60 : f32 to vector<8x128xf32>
    %190 = arith.cmpf oeq, %90, %189 : vector<8x128xf32>
    %191 = arith.select %190, %99, %117 : vector<8x128xi1>, vector<8x128xf32>
    %192 = arith.addf %188, %191 : vector<8x128xf32>
    %cst_61 = arith.constant 5.000000e+00 : f32
    %193 = vector.broadcast %cst_61 : f32 to vector<8x128xf32>
    %194 = arith.cmpf oeq, %90, %193 : vector<8x128xf32>
    %195 = arith.select %194, %116, %117 : vector<8x128xi1>, vector<8x128xf32>
    %cst_62 = arith.constant 6.000000e+00 : f32
    %196 = vector.broadcast %cst_62 : f32 to vector<8x128xf32>
    %197 = arith.cmpf oeq, %90, %196 : vector<8x128xf32>
    %198 = arith.select %197, %114, %117 : vector<8x128xi1>, vector<8x128xf32>
    %199 = arith.addf %195, %198 : vector<8x128xf32>
    %cst_63 = arith.constant 7.000000e+00 : f32
    %200 = vector.broadcast %cst_63 : f32 to vector<8x128xf32>
    %201 = arith.cmpf oeq, %90, %200 : vector<8x128xf32>
    %202 = arith.select %201, %104, %117 : vector<8x128xi1>, vector<8x128xf32>
    %203 = arith.addf %199, %202 : vector<8x128xf32>
    %cst_64 = arith.constant 8.000000e+00 : f32
    %204 = vector.broadcast %cst_64 : f32 to vector<8x128xf32>
    %205 = arith.cmpf oeq, %90, %204 : vector<8x128xf32>
    %206 = arith.select %205, %99, %117 : vector<8x128xi1>, vector<8x128xf32>
    %207 = arith.addf %203, %206 : vector<8x128xf32>
    %cst_65 = arith.constant 6.000000e+00 : f32
    %208 = vector.broadcast %cst_65 : f32 to vector<8x128xf32>
    %209 = arith.cmpf oeq, %90, %208 : vector<8x128xf32>
    %210 = arith.select %209, %116, %117 : vector<8x128xi1>, vector<8x128xf32>
    %cst_66 = arith.constant 7.000000e+00 : f32
    %211 = vector.broadcast %cst_66 : f32 to vector<8x128xf32>
    %212 = arith.cmpf oeq, %90, %211 : vector<8x128xf32>
    %213 = arith.select %212, %114, %117 : vector<8x128xi1>, vector<8x128xf32>
    %214 = arith.addf %210, %213 : vector<8x128xf32>
    %cst_67 = arith.constant 8.000000e+00 : f32
    %215 = vector.broadcast %cst_67 : f32 to vector<8x128xf32>
    %216 = arith.cmpf oeq, %90, %215 : vector<8x128xf32>
    %217 = arith.select %216, %104, %117 : vector<8x128xi1>, vector<8x128xf32>
    %218 = arith.addf %214, %217 : vector<8x128xf32>
    %cst_68 = arith.constant 9.000000e+00 : f32
    %219 = vector.broadcast %cst_68 : f32 to vector<8x128xf32>
    %220 = arith.cmpf oeq, %90, %219 : vector<8x128xf32>
    %221 = arith.select %220, %99, %117 : vector<8x128xi1>, vector<8x128xf32>
    %222 = arith.addf %218, %221 : vector<8x128xf32>
    %cst_69 = arith.constant 7.000000e+00 : f32
    %223 = vector.broadcast %cst_69 : f32 to vector<8x128xf32>
    %224 = arith.cmpf oeq, %90, %223 : vector<8x128xf32>
    %225 = arith.select %224, %116, %117 : vector<8x128xi1>, vector<8x128xf32>
    %cst_70 = arith.constant 8.000000e+00 : f32
    %226 = vector.broadcast %cst_70 : f32 to vector<8x128xf32>
    %227 = arith.cmpf oeq, %90, %226 : vector<8x128xf32>
    %228 = arith.select %227, %114, %117 : vector<8x128xi1>, vector<8x128xf32>
    %229 = arith.addf %225, %228 : vector<8x128xf32>
    %cst_71 = arith.constant 9.000000e+00 : f32
    %230 = vector.broadcast %cst_71 : f32 to vector<8x128xf32>
    %231 = arith.cmpf oeq, %90, %230 : vector<8x128xf32>
    %232 = arith.select %231, %104, %117 : vector<8x128xi1>, vector<8x128xf32>
    %233 = arith.addf %229, %232 : vector<8x128xf32>
    %cst_72 = arith.constant 1.000000e+01 : f32
    %234 = vector.broadcast %cst_72 : f32 to vector<8x128xf32>
    %235 = arith.cmpf oeq, %90, %234 : vector<8x128xf32>
    %236 = arith.select %235, %99, %117 : vector<8x128xi1>, vector<8x128xf32>
    %237 = arith.addf %233, %236 : vector<8x128xf32>
    %238 = arith.truncf %132 : vector<8x128xf32> to vector<8x128xbf16>
    %239 = arith.truncf %147 : vector<8x128xf32> to vector<8x128xbf16>
    %240 = arith.truncf %162 : vector<8x128xf32> to vector<8x128xbf16>
    %241 = arith.truncf %177 : vector<8x128xf32> to vector<8x128xbf16>
    %242 = arith.truncf %192 : vector<8x128xf32> to vector<8x128xbf16>
    %243 = arith.truncf %207 : vector<8x128xf32> to vector<8x128xbf16>
    %244 = arith.truncf %222 : vector<8x128xf32> to vector<8x128xbf16>
    %245 = arith.truncf %237 : vector<8x128xf32> to vector<8x128xbf16>
    %246 = tpu.concatenate %238, %239, %240, %241, %242, %243, %244, %245 in 1 : vector<8x128xbf16>, vector<8x128xbf16>, vector<8x128xbf16>, vector<8x128xbf16>, vector<8x128xbf16>, vector<8x128xbf16>, vector<8x128xbf16>, vector<8x128xbf16> -> vector<8x1024xbf16>
    %c0_73 = arith.constant 0 : index
    %c0_74 = arith.constant 0 : index
    %247 = vector.load %arg9[%c0_73, %c0_74] : memref<1024x128xbf16, #tpu.memory_space<vmem>>, vector<1024x128xbf16>
    %cst_75 = arith.constant dense<0.000000e+00> : vector<8x128xf32>
    %248 = tpu.matmul %246, %247, %cst_75 {dimension_numbers = #tpu.dot_dimension_numbers<[1], [0], [0], [1], [0, 0, 1, 1], [], []>} : vector<8x1024xbf16>, vector<1024x128xbf16>, vector<8x128xf32> -> vector<8x128xf32>
    %249 = arith.addf %85, %248 : vector<8x128xf32>
    %250 = arith.negf %249 : vector<8x128xf32>
    %251 = math.exp %250 : vector<8x128xf32>
    %cst_76 = arith.constant 1.000000e+00 : f32
    %252 = vector.broadcast %cst_76 : f32 to vector<8x128xf32>
    %253 = arith.addf %252, %251 : vector<8x128xf32>
    %254 = arith.divf %252, %253 : vector<8x128xf32>
    %255 = arith.mulf %249, %254 : vector<8x128xf32>
    %256 = arith.truncf %255 : vector<8x128xf32> to vector<8x128xbf16>
    %c0_77 = arith.constant 0 : index
    %c0_78 = arith.constant 0 : index
    %257 = vector.load %arg10[%c0_77, %c0_78] : memref<128x128xbf16, #tpu.memory_space<vmem>>, vector<128x128xbf16>
    %cst_79 = arith.constant dense<0.000000e+00> : vector<8x128xf32>
    %258 = tpu.matmul %256, %257, %cst_79 {dimension_numbers = #tpu.dot_dimension_numbers<[1], [0], [0], [1], [0, 0, 1, 1], [], []>} : vector<8x128xbf16>, vector<128x128xbf16>, vector<8x128xf32> -> vector<8x128xf32>
    %cst_80 = arith.constant -2.200000e+00 : f32
    %259 = vector.broadcast %cst_80 : f32 to vector<8x128xf32>
    %260 = arith.subf %249, %259 : vector<8x128xf32>
    %cst_81 = arith.constant 2.500000e+00 : f32
    %261 = vector.broadcast %cst_81 : f32 to vector<8x128xf32>
    %262 = arith.mulf %260, %261 : vector<8x128xf32>
    %263 = math.floor %262 : vector<8x128xf32>
    %264 = arith.subf %262, %263 : vector<8x128xf32>
    %265 = arith.mulf %264, %264 : vector<8x128xf32>
    %266 = arith.mulf %265, %264 : vector<8x128xf32>
    %cst_82 = arith.constant 1.000000e+00 : f32
    %267 = vector.broadcast %cst_82 : f32 to vector<8x128xf32>
    %268 = arith.subf %267, %264 : vector<8x128xf32>
    %269 = arith.mulf %268, %268 : vector<8x128xf32>
    %270 = arith.mulf %269, %268 : vector<8x128xf32>
    %cst_83 = arith.constant 0.166666672 : f32
    %271 = vector.broadcast %cst_83 : f32 to vector<8x128xf32>
    %272 = arith.mulf %270, %271 : vector<8x128xf32>
    %cst_84 = arith.constant 5.000000e-01 : f32
    %273 = vector.broadcast %cst_84 : f32 to vector<8x128xf32>
    %274 = arith.mulf %273, %266 : vector<8x128xf32>
    %275 = arith.subf %274, %265 : vector<8x128xf32>
    %cst_85 = arith.constant 0.666666686 : f32
    %276 = vector.broadcast %cst_85 : f32 to vector<8x128xf32>
    %277 = arith.addf %275, %276 : vector<8x128xf32>
    %cst_86 = arith.constant -5.000000e-01 : f32
    %278 = vector.broadcast %cst_86 : f32 to vector<8x128xf32>
    %279 = arith.mulf %278, %266 : vector<8x128xf32>
    %cst_87 = arith.constant 5.000000e-01 : f32
    %280 = vector.broadcast %cst_87 : f32 to vector<8x128xf32>
    %281 = arith.mulf %280, %265 : vector<8x128xf32>
    %282 = arith.addf %279, %281 : vector<8x128xf32>
    %cst_88 = arith.constant 5.000000e-01 : f32
    %283 = vector.broadcast %cst_88 : f32 to vector<8x128xf32>
    %284 = arith.mulf %283, %264 : vector<8x128xf32>
    %285 = arith.addf %282, %284 : vector<8x128xf32>
    %cst_89 = arith.constant 0.166666672 : f32
    %286 = vector.broadcast %cst_89 : f32 to vector<8x128xf32>
    %287 = arith.addf %285, %286 : vector<8x128xf32>
    %cst_90 = arith.constant 0.166666672 : f32
    %288 = vector.broadcast %cst_90 : f32 to vector<8x128xf32>
    %289 = arith.mulf %266, %288 : vector<8x128xf32>
    %cst_91 = arith.constant 0.000000e+00 : f32
    %290 = vector.broadcast %cst_91 : f32 to vector<8x128xf32>
    %cst_92 = arith.constant 0.000000e+00 : f32
    %291 = vector.broadcast %cst_92 : f32 to vector<8x128xf32>
    %292 = arith.cmpf oeq, %263, %291 : vector<8x128xf32>
    %293 = arith.select %292, %289, %290 : vector<8x128xi1>, vector<8x128xf32>
    %cst_93 = arith.constant 1.000000e+00 : f32
    %294 = vector.broadcast %cst_93 : f32 to vector<8x128xf32>
    %295 = arith.cmpf oeq, %263, %294 : vector<8x128xf32>
    %296 = arith.select %295, %287, %290 : vector<8x128xi1>, vector<8x128xf32>
    %297 = arith.addf %293, %296 : vector<8x128xf32>
    %cst_94 = arith.constant 2.000000e+00 : f32
    %298 = vector.broadcast %cst_94 : f32 to vector<8x128xf32>
    %299 = arith.cmpf oeq, %263, %298 : vector<8x128xf32>
    %300 = arith.select %299, %277, %290 : vector<8x128xi1>, vector<8x128xf32>
    %301 = arith.addf %297, %300 : vector<8x128xf32>
    %cst_95 = arith.constant 3.000000e+00 : f32
    %302 = vector.broadcast %cst_95 : f32 to vector<8x128xf32>
    %303 = arith.cmpf oeq, %263, %302 : vector<8x128xf32>
    %304 = arith.select %303, %272, %290 : vector<8x128xi1>, vector<8x128xf32>
    %305 = arith.addf %301, %304 : vector<8x128xf32>
    %cst_96 = arith.constant 1.000000e+00 : f32
    %306 = vector.broadcast %cst_96 : f32 to vector<8x128xf32>
    %307 = arith.cmpf oeq, %263, %306 : vector<8x128xf32>
    %308 = arith.select %307, %289, %290 : vector<8x128xi1>, vector<8x128xf32>
    %cst_97 = arith.constant 2.000000e+00 : f32
    %309 = vector.broadcast %cst_97 : f32 to vector<8x128xf32>
    %310 = arith.cmpf oeq, %263, %309 : vector<8x128xf32>
    %311 = arith.select %310, %287, %290 : vector<8x128xi1>, vector<8x128xf32>
    %312 = arith.addf %308, %311 : vector<8x128xf32>
    %cst_98 = arith.constant 3.000000e+00 : f32
    %313 = vector.broadcast %cst_98 : f32 to vector<8x128xf32>
    %314 = arith.cmpf oeq, %263, %313 : vector<8x128xf32>
    %315 = arith.select %314, %277, %290 : vector<8x128xi1>, vector<8x128xf32>
    %316 = arith.addf %312, %315 : vector<8x128xf32>
    %cst_99 = arith.constant 4.000000e+00 : f32
    %317 = vector.broadcast %cst_99 : f32 to vector<8x128xf32>
    %318 = arith.cmpf oeq, %263, %317 : vector<8x128xf32>
    %319 = arith.select %318, %272, %290 : vector<8x128xi1>, vector<8x128xf32>
    %320 = arith.addf %316, %319 : vector<8x128xf32>
    %cst_100 = arith.constant 2.000000e+00 : f32
    %321 = vector.broadcast %cst_100 : f32 to vector<8x128xf32>
    %322 = arith.cmpf oeq, %263, %321 : vector<8x128xf32>
    %323 = arith.select %322, %289, %290 : vector<8x128xi1>, vector<8x128xf32>
    %cst_101 = arith.constant 3.000000e+00 : f32
    %324 = vector.broadcast %cst_101 : f32 to vector<8x128xf32>
    %325 = arith.cmpf oeq, %263, %324 : vector<8x128xf32>
    %326 = arith.select %325, %287, %290 : vector<8x128xi1>, vector<8x128xf32>
    %327 = arith.addf %323, %326 : vector<8x128xf32>
    %cst_102 = arith.constant 4.000000e+00 : f32
    %328 = vector.broadcast %cst_102 : f32 to vector<8x128xf32>
    %329 = arith.cmpf oeq, %263, %328 : vector<8x128xf32>
    %330 = arith.select %329, %277, %290 : vector<8x128xi1>, vector<8x128xf32>
    %331 = arith.addf %327, %330 : vector<8x128xf32>
    %cst_103 = arith.constant 5.000000e+00 : f32
    %332 = vector.broadcast %cst_103 : f32 to vector<8x128xf32>
    %333 = arith.cmpf oeq, %263, %332 : vector<8x128xf32>
    %334 = arith.select %333, %272, %290 : vector<8x128xi1>, vector<8x128xf32>
    %335 = arith.addf %331, %334 : vector<8x128xf32>
    %cst_104 = arith.constant 3.000000e+00 : f32
    %336 = vector.broadcast %cst_104 : f32 to vector<8x128xf32>
    %337 = arith.cmpf oeq, %263, %336 : vector<8x128xf32>
    %338 = arith.select %337, %289, %290 : vector<8x128xi1>, vector<8x128xf32>
    %cst_105 = arith.constant 4.000000e+00 : f32
    %339 = vector.broadcast %cst_105 : f32 to vector<8x128xf32>
    %340 = arith.cmpf oeq, %263, %339 : vector<8x128xf32>
    %341 = arith.select %340, %287, %290 : vector<8x128xi1>, vector<8x128xf32>
    %342 = arith.addf %338, %341 : vector<8x128xf32>
    %cst_106 = arith.constant 5.000000e+00 : f32
    %343 = vector.broadcast %cst_106 : f32 to vector<8x128xf32>
    %344 = arith.cmpf oeq, %263, %343 : vector<8x128xf32>
    %345 = arith.select %344, %277, %290 : vector<8x128xi1>, vector<8x128xf32>
    %346 = arith.addf %342, %345 : vector<8x128xf32>
    %cst_107 = arith.constant 6.000000e+00 : f32
    %347 = vector.broadcast %cst_107 : f32 to vector<8x128xf32>
    %348 = arith.cmpf oeq, %263, %347 : vector<8x128xf32>
    %349 = arith.select %348, %272, %290 : vector<8x128xi1>, vector<8x128xf32>
    %350 = arith.addf %346, %349 : vector<8x128xf32>
    %cst_108 = arith.constant 4.000000e+00 : f32
    %351 = vector.broadcast %cst_108 : f32 to vector<8x128xf32>
    %352 = arith.cmpf oeq, %263, %351 : vector<8x128xf32>
    %353 = arith.select %352, %289, %290 : vector<8x128xi1>, vector<8x128xf32>
    %cst_109 = arith.constant 5.000000e+00 : f32
    %354 = vector.broadcast %cst_109 : f32 to vector<8x128xf32>
    %355 = arith.cmpf oeq, %263, %354 : vector<8x128xf32>
    %356 = arith.select %355, %287, %290 : vector<8x128xi1>, vector<8x128xf32>
    %357 = arith.addf %353, %356 : vector<8x128xf32>
    %cst_110 = arith.constant 6.000000e+00 : f32
    %358 = vector.broadcast %cst_110 : f32 to vector<8x128xf32>
    %359 = arith.cmpf oeq, %263, %358 : vector<8x128xf32>
    %360 = arith.select %359, %277, %290 : vector<8x128xi1>, vector<8x128xf32>
    %361 = arith.addf %357, %360 : vector<8x128xf32>
    %cst_111 = arith.constant 7.000000e+00 : f32
    %362 = vector.broadcast %cst_111 : f32 to vector<8x128xf32>
    %363 = arith.cmpf oeq, %263, %362 : vector<8x128xf32>
    %364 = arith.select %363, %272, %290 : vector<8x128xi1>, vector<8x128xf32>
    %365 = arith.addf %361, %364 : vector<8x128xf32>
    %cst_112 = arith.constant 5.000000e+00 : f32
    %366 = vector.broadcast %cst_112 : f32 to vector<8x128xf32>
    %367 = arith.cmpf oeq, %263, %366 : vector<8x128xf32>
    %368 = arith.select %367, %289, %290 : vector<8x128xi1>, vector<8x128xf32>
    %cst_113 = arith.constant 6.000000e+00 : f32
    %369 = vector.broadcast %cst_113 : f32 to vector<8x128xf32>
    %370 = arith.cmpf oeq, %263, %369 : vector<8x128xf32>
    %371 = arith.select %370, %287, %290 : vector<8x128xi1>, vector<8x128xf32>
    %372 = arith.addf %368, %371 : vector<8x128xf32>
    %cst_114 = arith.constant 7.000000e+00 : f32
    %373 = vector.broadcast %cst_114 : f32 to vector<8x128xf32>
    %374 = arith.cmpf oeq, %263, %373 : vector<8x128xf32>
    %375 = arith.select %374, %277, %290 : vector<8x128xi1>, vector<8x128xf32>
    %376 = arith.addf %372, %375 : vector<8x128xf32>
    %cst_115 = arith.constant 8.000000e+00 : f32
    %377 = vector.broadcast %cst_115 : f32 to vector<8x128xf32>
    %378 = arith.cmpf oeq, %263, %377 : vector<8x128xf32>
    %379 = arith.select %378, %272, %290 : vector<8x128xi1>, vector<8x128xf32>
    %380 = arith.addf %376, %379 : vector<8x128xf32>
    %cst_116 = arith.constant 6.000000e+00 : f32
    %381 = vector.broadcast %cst_116 : f32 to vector<8x128xf32>
    %382 = arith.cmpf oeq, %263, %381 : vector<8x128xf32>
    %383 = arith.select %382, %289, %290 : vector<8x128xi1>, vector<8x128xf32>
    %cst_117 = arith.constant 7.000000e+00 : f32
    %384 = vector.broadcast %cst_117 : f32 to vector<8x128xf32>
    %385 = arith.cmpf oeq, %263, %384 : vector<8x128xf32>
    %386 = arith.select %385, %287, %290 : vector<8x128xi1>, vector<8x128xf32>
    %387 = arith.addf %383, %386 : vector<8x128xf32>
    %cst_118 = arith.constant 8.000000e+00 : f32
    %388 = vector.broadcast %cst_118 : f32 to vector<8x128xf32>
    %389 = arith.cmpf oeq, %263, %388 : vector<8x128xf32>
    %390 = arith.select %389, %277, %290 : vector<8x128xi1>, vector<8x128xf32>
    %391 = arith.addf %387, %390 : vector<8x128xf32>
    %cst_119 = arith.constant 9.000000e+00 : f32
    %392 = vector.broadcast %cst_119 : f32 to vector<8x128xf32>
    %393 = arith.cmpf oeq, %263, %392 : vector<8x128xf32>
    %394 = arith.select %393, %272, %290 : vector<8x128xi1>, vector<8x128xf32>
    %395 = arith.addf %391, %394 : vector<8x128xf32>
    %cst_120 = arith.constant 7.000000e+00 : f32
    %396 = vector.broadcast %cst_120 : f32 to vector<8x128xf32>
    %397 = arith.cmpf oeq, %263, %396 : vector<8x128xf32>
    %398 = arith.select %397, %289, %290 : vector<8x128xi1>, vector<8x128xf32>
    %cst_121 = arith.constant 8.000000e+00 : f32
    %399 = vector.broadcast %cst_121 : f32 to vector<8x128xf32>
    %400 = arith.cmpf oeq, %263, %399 : vector<8x128xf32>
    %401 = arith.select %400, %287, %290 : vector<8x128xi1>, vector<8x128xf32>
    %402 = arith.addf %398, %401 : vector<8x128xf32>
    %cst_122 = arith.constant 9.000000e+00 : f32
    %403 = vector.broadcast %cst_122 : f32 to vector<8x128xf32>
    %404 = arith.cmpf oeq, %263, %403 : vector<8x128xf32>
    %405 = arith.select %404, %277, %290 : vector<8x128xi1>, vector<8x128xf32>
    %406 = arith.addf %402, %405 : vector<8x128xf32>
    %cst_123 = arith.constant 1.000000e+01 : f32
    %407 = vector.broadcast %cst_123 : f32 to vector<8x128xf32>
    %408 = arith.cmpf oeq, %263, %407 : vector<8x128xf32>
    %409 = arith.select %408, %272, %290 : vector<8x128xi1>, vector<8x128xf32>
    %410 = arith.addf %406, %409 : vector<8x128xf32>
    %411 = arith.truncf %305 : vector<8x128xf32> to vector<8x128xbf16>
    %412 = arith.truncf %320 : vector<8x128xf32> to vector<8x128xbf16>
    %413 = arith.truncf %335 : vector<8x128xf32> to vector<8x128xbf16>
    %414 = arith.truncf %350 : vector<8x128xf32> to vector<8x128xbf16>
    %415 = arith.truncf %365 : vector<8x128xf32> to vector<8x128xbf16>
    %416 = arith.truncf %380 : vector<8x128xf32> to vector<8x128xbf16>
    %417 = arith.truncf %395 : vector<8x128xf32> to vector<8x128xbf16>
    %418 = arith.truncf %410 : vector<8x128xf32> to vector<8x128xbf16>
    %419 = tpu.concatenate %411, %412, %413, %414, %415, %416, %417, %418 in 1 : vector<8x128xbf16>, vector<8x128xbf16>, vector<8x128xbf16>, vector<8x128xbf16>, vector<8x128xbf16>, vector<8x128xbf16>, vector<8x128xbf16>, vector<8x128xbf16> -> vector<8x1024xbf16>
    %c0_124 = arith.constant 0 : index
    %c0_125 = arith.constant 0 : index
    %420 = vector.load %arg11[%c0_124, %c0_125] : memref<1024x128xbf16, #tpu.memory_space<vmem>>, vector<1024x128xbf16>
    %cst_126 = arith.constant dense<0.000000e+00> : vector<8x128xf32>
    %421 = tpu.matmul %419, %420, %cst_126 {dimension_numbers = #tpu.dot_dimension_numbers<[1], [0], [0], [1], [0, 0, 1, 1], [], []>} : vector<8x1024xbf16>, vector<1024x128xbf16>, vector<8x128xf32> -> vector<8x128xf32>
    %422 = arith.addf %258, %421 : vector<8x128xf32>
    %c0_127 = arith.constant 0 : index
    %c0_128 = arith.constant 0 : index
    %423 = vector.load %arg12[%c0_127, %c0_128] : memref<8x128xf32, #tpu.memory_space<vmem>>, vector<8x128xf32>
    tpu.vector_store %arg12[%c0_127, %c0_128], %422 {strides = array<i32>} : memref<8x128xf32, #tpu.memory_space<vmem>>, vector<8x128xf32>,
    return
  }
  func.func @transform_0(%arg0: i32) -> (i32, i32) {
    %c0_i32 = arith.constant 0 : i32
    %c0_i32_0 = arith.constant 0 : i32
    return %arg0, %c0_i32 : i32, i32
  }
  func.func @transform_1(%arg0: i32) -> (i32, i32) {
    %c0_i32 = arith.constant 0 : i32
    %c0_i32_0 = arith.constant 0 : i32
    %c0_i32_1 = arith.constant 0 : i32
    return %c0_i32, %c0_i32_0 : i32, i32
  }
  func.func @transform_2(%arg0: i32) -> (i32, i32) {
    %c0_i32 = arith.constant 0 : i32
    %c0_i32_0 = arith.constant 0 : i32
    %c0_i32_1 = arith.constant 0 : i32
    return %c0_i32, %c0_i32_0 : i32, i32
  }
  func.func @transform_3(%arg0: i32) -> (i32, i32) {
    %c0_i32 = arith.constant 0 : i32
    %c0_i32_0 = arith.constant 0 : i32
    %c0_i32_1 = arith.constant 0 : i32
    return %c0_i32, %c0_i32_0 : i32, i32
  }
  func.func @transform_4(%arg0: i32) -> (i32, i32) {
    %c0_i32 = arith.constant 0 : i32
    %c0_i32_0 = arith.constant 0 : i32
    %c0_i32_1 = arith.constant 0 : i32
    return %c0_i32, %c0_i32_0 : i32, i32
  }
  func.func @transform_5(%arg0: i32) -> (i32, i32) {
    %c0_i32 = arith.constant 0 : i32
    %c0_i32_0 = arith.constant 0 : i32
    %c0_i32_1 = arith.constant 0 : i32
    return %c0_i32, %c0_i32_0 : i32, i32
  }
  func.func @transform_6(%arg0: i32) -> (i32, i32) {
    %c0_i32 = arith.constant 0 : i32
    %c0_i32_0 = arith.constant 0 : i32
    %c0_i32_1 = arith.constant 0 : i32
    return %c0_i32, %c0_i32_0 : i32, i32
  }
  func.func @transform_7(%arg0: i32) -> (i32, i32) {
    %c0_i32 = arith.constant 0 : i32
    %c0_i32_0 = arith.constant 0 : i32
    %c0_i32_1 = arith.constant 0 : i32
    return %c0_i32, %c0_i32_0 : i32, i32
  }
  func.func @transform_8(%arg0: i32) -> (i32, i32) {
    %c0_i32 = arith.constant 0 : i32
    %c0_i32_0 = arith.constant 0 : i32
    %c0_i32_1 = arith.constant 0 : i32
    return %c0_i32, %c0_i32_0 : i32, i32
  }
  func.func @transform_9(%arg0: i32) -> (i32, i32) {
    %c0_i32 = arith.constant 0 : i32
    %c0_i32_0 = arith.constant 0 : i32
    %c0_i32_1 = arith.constant 0 : i32
    return %c0_i32, %c0_i32_0 : i32, i32
  }
  func.func @transform_10(%arg0: i32) -> (i32, i32) {
    %c0_i32 = arith.constant 0 : i32
    %c0_i32_0 = arith.constant 0 : i32
    %c0_i32_1 = arith.constant 0 : i32
    return %c0_i32, %c0_i32_0 : i32, i32
  }
  func.func @transform_11(%arg0: i32) -> (i32, i32) {
    %c0_i32 = arith.constant 0 : i32
    %c0_i32_0 = arith.constant 0 : i32
    return %arg0, %c0_i32 : i32, i32
  }
}

</mosaic_0001>

<llo_original>
// kernel: tpu_custom_call.1
$region0: #{tpu_custom_call.1}
  #allocation0 [shape = 'u32[]', space=smem, size = 0x4, offset = 0x4, fixed_abs, tag = 'smem constant byte address 0x4 - core index']
  #allocation1 [shape = 'u32[72,128]{1,0:T(1,128)}', space=vmem, size = 0x9000, scoped, tag = 'internal scratch']
  %s0 = inlined_call_operand.hbm [shape: f32[8,128], index: 0, kind: input, shape index: {}]
  %s1 = inlined_call_operand.hbm [shape: bf16[128,384], index: 1, kind: input, shape index: {}]
  %s2 = inlined_call_operand.hbm [shape: f32[1,384], index: 2, kind: input, shape index: {}]
  %s3 = inlined_call_operand.hbm [shape: bf16[128,384], index: 3, kind: input, shape index: {}]
  %s4 = inlined_call_operand.vmem [shape: f32[1,384], index: 4, kind: input, shape index: {}]
  %s5 = inlined_call_operand.vmem [shape: f32[1,128], index: 5, kind: input, shape index: {}]
  %s6 = inlined_call_operand.vmem [shape: f32[1,128], index: 6, kind: input, shape index: {}]
  %s7 = inlined_call_operand.hbm [shape: bf16[128,128], index: 7, kind: input, shape index: {}]
  %s8 = inlined_call_operand.hbm [shape: bf16[1024,128], index: 8, kind: input, shape index: {}]
  %s9 = inlined_call_operand.hbm [shape: bf16[128,128], index: 9, kind: input, shape index: {}]
  %s10 = inlined_call_operand.hbm [shape: bf16[1024,128], index: 10, kind: input, shape index: {}]
  %s11 = inlined_call_operand.hbm [shape: f32[8,128], index: 11, kind: output, shape index: {}]
  %s12 = sld [smem:[#allocation0]]
  $region86: #{tpu_custom_call.1} parent=0
    _
  %s14 = ssub.s32 1, %s12
  %s15 = scalar_select 0, %s14, %s12
  $region1: #{tpu_custom_call.1} parent=0
    #allocation2 [shape = 'u8[4096]{0}', space=vmem, size = 0x1000, scoped, tag = 'input window, operand 0, single buffered']
    #allocation3 [shape = 's32[1]{0}', space=sflag, size = 0x4, scoped, tag = 'scoped memory for tpu_custom_call.1']
    #allocation4 [shape = 's32[1]{0}', space=sflag, size = 0x4, scoped, tag = 'scoped memory for tpu_custom_call.1']
    #allocation5 [shape = 'u8[98304]{0}', space=vmem, size = 0x18000, scoped, tag = 'input window, operand 1, single buffered']
    #allocation6 [shape = 's32[1]{0}', space=sflag, size = 0x4, scoped, tag = 'scoped memory for tpu_custom_call.1']
    #allocation7 [shape = 'u8[1536]{0}', space=vmem, size = 0x800, scoped, tag = 'input window, operand 2, single buffered']
    #allocation8 [shape = 'u8[98304]{0}', space=vmem, size = 0x18000, scoped, tag = 'input window, operand 3, single buffered']
    #allocation9 [shape = 's32[1]{0}', space=sflag, size = 0x4, scoped, tag = 'scoped memory for tpu_custom_call.1']
    #allocation10 [shape = 'u8[32768]{0}', space=vmem, size = 0x8000, scoped, tag = 'input window, operand 7, single buffered']
    #allocation11 [shape = 'u8[262144]{0}', space=vmem, size = 0x40000, scoped, tag = 'input window, operand 8, single buffered']
    #allocation12 [shape = 's32[1]{0}', space=sflag, size = 0x4, scoped, tag = 'scoped memory for tpu_custom_call.1']
    #allocation13 [shape = 'u8[32768]{0}', space=vmem, size = 0x8000, scoped, tag = 'input window, operand 9, single buffered']
    #allocation14 [shape = 'u8[262144]{0}', space=vmem, size = 0x40000, scoped, tag = 'input window, operand 10, single buffered']
    #allocation15 [shape = 's32[1]{0}', space=sflag, size = 0x4, scoped, tag = 'scoped memory for tpu_custom_call.1']
    #allocation16 [shape = 'u8[4096]{0}', space=vmem, size = 0x1000, scoped, tag = 'output window, operand 0, single buffered']
    %16 = vsyncpa [#allocation3], 0
    %17 = vsyncpa [#allocation6], 0
    %18 = vsyncpa [#allocation9], 0
    %19 = vsyncpa [#allocation12], 0
    %20 = vsyncpa [#allocation15], 0
    %21 = vsyncpa [#allocation4], 0
    // Predicated region
    $region2: #{tpu_custom_call.1} parent=1 // pred_check
      _
    $region3: #{tpu_custom_call.1} parent=1 // pred_check_branch
      %23 = sbr.rel (0) target = $region5
    $region4: #{tpu_custom_call.1} parent=1 // pred_region
      %25 = vsyncadd [#allocation3], 0
      %s27 = sshll.u32 %s0, 4
      %s28 = int_to_ptr.hbm [resolvable:$true] %s27
      %s29 = sshll.u32 [#allocation2], 4
      %s30 = int_to_ptr.vmem [resolvable:$true] %s29
      %32 = dma.hbm_to_vmem [thread:$0]  %s28, 128, %s30, [#allocation3]
    $region5: #{tpu_custom_call.1} parent=1 // pred_fallthru
      _
    // Predicated region
    $region6: #{tpu_custom_call.1} parent=1 // pred_check
      _
    $region7: #{tpu_custom_call.1} parent=1 // pred_check_branch
      %34 = sbr.rel (0) target = $region9
    $region8: #{tpu_custom_call.1} parent=1 // pred_region
      %36 = vsyncadd [#allocation6], 0
      %s37 = sshll.u32 %s1, 4
      %s38 = int_to_ptr.hbm [resolvable:$true] %s37
      %s39 = sshll.u32 [#allocation5], 4
      %s40 = int_to_ptr.vmem [resolvable:$true] %s39
      %45 = dma.hbm_to_vmem [thread:$0]  %s38, 3072, %s40, [#allocation6], 192, 192, 12
    $region9: #{tpu_custom_call.1} parent=1 // pred_fallthru
      _
    // Predicated region
    $region10: #{tpu_custom_call.1} parent=1 // pred_check
      _
    $region11: #{tpu_custom_call.1} parent=1 // pred_check_branch
      %47 = sbr.rel (0) target = $region13
    $region12: #{tpu_custom_call.1} parent=1 // pred_region
      %49 = vsyncadd [#allocation6], 0
      %s51 = sshll.u32 %s2, 4
      %s52 = int_to_ptr.hbm [resolvable:$true] %s51
      %s53 = sshll.u32 [#allocation7], 4
      %s54 = int_to_ptr.vmem [resolvable:$true] %s53
      %56 = dma.hbm_to_vmem [thread:$0]  %s52, 48, %s54, [#allocation6]
    $region13: #{tpu_custom_call.1} parent=1 // pred_fallthru
      _
    // Predicated region
    $region14: #{tpu_custom_call.1} parent=1 // pred_check
      _
    $region15: #{tpu_custom_call.1} parent=1 // pred_check_branch
      %58 = sbr.rel (0) target = $region17
    $region16: #{tpu_custom_call.1} parent=1 // pred_region
      %60 = vsyncadd [#allocation9], 0
      %s61 = sshll.u32 %s3, 4
      %s62 = int_to_ptr.hbm [resolvable:$true] %s61
      %s63 = sshll.u32 [#allocation8], 4
      %s64 = int_to_ptr.vmem [resolvable:$true] %s63
      %69 = dma.hbm_to_vmem [thread:$0]  %s62, 3072, %s64, [#allocation9], 192, 192, 12
    $region17: #{tpu_custom_call.1} parent=1 // pred_fallthru
      _
    // Predicated region
    $region18: #{tpu_custom_call.1} parent=1 // pred_check
      _
    $region19: #{tpu_custom_call.1} parent=1 // pred_check_branch
      %71 = sbr.rel (0) target = $region21
    $region20: #{tpu_custom_call.1} parent=1 // pred_region
      _
    $region21: #{tpu_custom_call.1} parent=1 // pred_fallthru
      _
    // Predicated region
    $region22: #{tpu_custom_call.1} parent=1 // pred_check
      _
    $region23: #{tpu_custom_call.1} parent=1 // pred_check_branch
      %73 = sbr.rel (0) target = $region25
    $region24: #{tpu_custom_call.1} parent=1 // pred_region
      _
    $region25: #{tpu_custom_call.1} parent=1 // pred_fallthru
      _
    // Predicated region
    $region26: #{tpu_custom_call.1} parent=1 // pred_check
      _
    $region27: #{tpu_custom_call.1} parent=1 // pred_check_branch
      %75 = sbr.rel (0) target = $region29
    $region28: #{tpu_custom_call.1} parent=1 // pred_region
      _
    $region29: #{tpu_custom_call.1} parent=1 // pred_fallthru
      _
    // Predicated region
    $region30: #{tpu_custom_call.1} parent=1 // pred_check
      _
    $region31: #{tpu_custom_call.1} parent=1 // pred_check_branch
      %77 = sbr.rel (0) target = $region33
    $region32: #{tpu_custom_call.1} parent=1 // pred_region
      %79 = vsyncadd [#allocation9], 0
      %s80 = sshll.u32 %s7, 4
      %s81 = int_to_ptr.hbm [resolvable:$true] %s80
      %s82 = sshll.u32 [#allocation10], 4
      %s83 = int_to_ptr.vmem [resolvable:$true] %s82
      %88 = dma.hbm_to_vmem [thread:$0]  %s81, 1024, %s83, [#allocation9], 64, 64, 4
    $region33: #{tpu_custom_call.1} parent=1 // pred_fallthru
      _
    // Predicated region
    $region34: #{tpu_custom_call.1} parent=1 // pred_check
      _
    $region35: #{tpu_custom_call.1} parent=1 // pred_check_branch
      %90 = sbr.rel (0) target = $region37
    $region36: #{tpu_custom_call.1} parent=1 // pred_region
      %92 = vsyncadd [#allocation12], 0
      %s93 = sshll.u32 %s8, 4
      %s94 = int_to_ptr.hbm [resolvable:$true] %s93
      %s95 = sshll.u32 [#allocation11], 4
      %s96 = int_to_ptr.vmem [resolvable:$true] %s95
      %101 = dma.hbm_to_vmem [thread:$0]  %s94, 8192, %s96, [#allocation12], 64, 64, 4
    $region37: #{tpu_custom_call.1} parent=1 // pred_fallthru
      _
    // Predicated region
    $region38: #{tpu_custom_call.1} parent=1 // pred_check
      _
    $region39: #{tpu_custom_call.1} parent=1 // pred_check_branch
      %103 = sbr.rel (0) target = $region41
    $region40: #{tpu_custom_call.1} parent=1 // pred_region
      %105 = vsyncadd [#allocation12], 0
      %s106 = sshll.u32 %s9, 4
      %s107 = int_to_ptr.hbm [resolvable:$true] %s106
      %s108 = sshll.u32 [#allocation13], 4
      %s109 = int_to_ptr.vmem [resolvable:$true] %s108
      %114 = dma.hbm_to_vmem [thread:$0]  %s107, 1024, %s109, [#allocation12], 64, 64, 4
    $region41: #{tpu_custom_call.1} parent=1 // pred_fallthru
      _
    // Predicated region
    $region42: #{tpu_custom_call.1} parent=1 // pred_check
      _
    $region43: #{tpu_custom_call.1} parent=1 // pred_check_branch
      %116 = sbr.rel (0) target = $region45
    $region44: #{tpu_custom_call.1} parent=1 // pred_region
      %118 = vsyncadd [#allocation15], 0
      %s119 = sshll.u32 %s10, 4
      %s120 = int_to_ptr.hbm [resolvable:$true] %s119
      %s121 = sshll.u32 [#allocation14], 4
      %s122 = int_to_ptr.vmem [resolvable:$true] %s121
      %127 = dma.hbm_to_vmem [thread:$0]  %s120, 8192, %s122, [#allocation15], 64, 64, 4
    $region45: #{tpu_custom_call.1} parent=1 // pred_fallthru
      _
    // Predicated region
    $region46: #{tpu_custom_call.1} parent=1 // pred_check
      _
    $region47: #{tpu_custom_call.1} parent=1 // pred_check_branch
      %129 = sbr.rel (0) target = $region49
    $region48: #{tpu_custom_call.1} parent=1 // pred_region
      %131 = dma.done [#allocation3], 128
    $region49: #{tpu_custom_call.1} parent=1 // pred_fallthru
      _
    // Predicated region
    $region50: #{tpu_custom_call.1} parent=1 // pred_check
      _
    $region51: #{tpu_custom_call.1} parent=1 // pred_check_branch
      %133 = sbr.rel (0) target = $region53
    $region52: #{tpu_custom_call.1} parent=1 // pred_region
      %135 = dma.done [#allocation6], 3072
    $region53: #{tpu_custom_call.1} parent=1 // pred_fallthru
      _
    // Predicated region
    $region54: #{tpu_custom_call.1} parent=1 // pred_check
      _
    $region55: #{tpu_custom_call.1} parent=1 // pred_check_branch
      %137 = sbr.rel (0) target = $region57
    $region56: #{tpu_custom_call.1} parent=1 // pred_region
      %139 = dma.done [#allocation6], 48
    $region57: #{tpu_custom_call.1} parent=1 // pred_fallthru
      _
    // Predicated region
    $region58: #{tpu_custom_call.1} parent=1 // pred_check
      _
    $region59: #{tpu_custom_call.1} parent=1 // pred_check_branch
      %141 = sbr.rel (0) target = $region61
    $region60: #{tpu_custom_call.1} parent=1 // pred_region
      %143 = dma.done [#allocation9], 3072
    $region61: #{tpu_custom_call.1} parent=1 // pred_fallthru
      _
    // Predicated region
    $region62: #{tpu_custom_call.1} parent=1 // pred_check
      _
    $region63: #{tpu_custom_call.1} parent=1 // pred_check_branch
      %145 = sbr.rel (0) target = $region65
    $region64: #{tpu_custom_call.1} parent=1 // pred_region
      %147 = dma.done [#allocation9], 1024
    $region65: #{tpu_custom_call.1} parent=1 // pred_fallthru
      _
    // Predicated region
    $region66: #{tpu_custom_call.1} parent=1 // pred_check
      _
    $region67: #{tpu_custom_call.1} parent=1 // pred_check_branch
      %149 = sbr.rel (0) target = $region69
    $region68: #{tpu_custom_call.1} parent=1 // pred_region
      %151 = dma.done [#allocation12], 8192
    $region69: #{tpu_custom_call.1} parent=1 // pred_fallthru
      _
    // Predicated region
    $region70: #{tpu_custom_call.1} parent=1 // pred_check
      _
    $region71: #{tpu_custom_call.1} parent=1 // pred_check_branch
      %153 = sbr.rel (0) target = $region73
    $region72: #{tpu_custom_call.1} parent=1 // pred_region
      %155 = dma.done [#allocation12], 1024
    $region73: #{tpu_custom_call.1} parent=1 // pred_fallthru
      _
    // Predicated region
    $region74: #{tpu_custom_call.1} parent=1 // pred_check
      _
    $region75: #{tpu_custom_call.1} parent=1 // pred_check_branch
      %157 = sbr.rel (0) target = $region77
    $region76: #{tpu_custom_call.1} parent=1 // pred_region
      %159 = dma.done [#allocation15], 8192
    $region77: #{tpu_custom_call.1} parent=1 // pred_fallthru
      _
    %v160 = vld [vmem:[#allocation2] sm:$0xff]
    %v161 = vpack.c.bf16 %v160, %v160
    %v162 = vld [vmem:[#allocation5] sm:$0xff]
    %v163 = vld [vmem:[#allocation5 + $0x8] sm:$0xf]
    %v164 = vld [vmem:[#allocation5 + $0xc] sm:$0xff]
    %v165 = vld [vmem:[#allocation5 + $0x14] sm:$0xf]
    %v166 = vld [vmem:[#allocation5 + $0x18] sm:$0xff]
    %v167 = vld [vmem:[#allocation5 + $0x20] sm:$0xf]
    %v168 = vld [vmem:[#allocation5 + $0x24] sm:$0xff]
    %v169 = vld [vmem:[#allocation5 + $0x2c] sm:$0xf]
    %v170 = vld [vmem:[#allocation5 + $0x30] sm:$0xff]
    %v171 = vld [vmem:[#allocation5 + $0x38] sm:$0xf]
    %v172 = vld [vmem:[#allocation5 + $0x3c] sm:$0xff]
    %v173 = vld [vmem:[#allocation5 + $0x44] sm:$0xf]
    %v174 = vld [vmem:[#allocation5 + $0x48] sm:$0xff]
    %v175 = vld [vmem:[#allocation5 + $0x50] sm:$0xf]
    %v176 = vld [vmem:[#allocation5 + $0x54] sm:$0xff]
    %v177 = vld [vmem:[#allocation5 + $0x5c] sm:$0xf]
    %v178 = vld [vmem:[#allocation5 + $0x60] sm:$0xff]
    %v179 = vld [vmem:[#allocation5 + $0x68] sm:$0xf]
    %v180 = vld [vmem:[#allocation5 + $0x6c] sm:$0xff]
    %v181 = vld [vmem:[#allocation5 + $0x74] sm:$0xf]
    %v182 = vld [vmem:[#allocation5 + $0x78] sm:$0xff]
    %v183 = vld [vmem:[#allocation5 + $0x80] sm:$0xf]
    %v184 = vld [vmem:[#allocation5 + $0x84] sm:$0xff]
    %v185 = vld [vmem:[#allocation5 + $0x8c] sm:$0xf]
    %v186 = vld [vmem:[#allocation5 + $0x90] sm:$0xff]
    %v187 = vld [vmem:[#allocation5 + $0x98] sm:$0xf]
    %v188 = vld [vmem:[#allocation5 + $0x9c] sm:$0xff]
    %v189 = vld [vmem:[#allocation5 + $0xa4] sm:$0xf]
    %v190 = vld [vmem:[#allocation5 + $0xa8] sm:$0xff]
    %v191 = vld [vmem:[#allocation5 + $0xb0] sm:$0xf]
    %v192 = vld [vmem:[#allocation5 + $0xb4] sm:$0xff]
    %v193 = vld [vmem:[#allocation5 + $0xbc] sm:$0xf]
    %v194 = vld [vmem:[#allocation7] sm:$0x7]
    %v196 = vperm.slane %v194, 0
    %v197 = vperm.slane %v194, 1
    %v198 = vperm.slane %v194, 2
    %v234 = vunpack.c.l.b16 %v162
    %v235 = vunpack.c.h.b16 %v162
    %v236 = vunpack.c.l.b16 %v163
    %v237 = vunpack.c.l.b16 %v164
    %v238 = vunpack.c.h.b16 %v164
    %v239 = vunpack.c.l.b16 %v165
    %v240 = vunpack.c.l.b16 %v166
    %v241 = vunpack.c.h.b16 %v166
    %v242 = vunpack.c.l.b16 %v167
    %v243 = vunpack.c.l.b16 %v168
    %v244 = vunpack.c.h.b16 %v168
    %v245 = vunpack.c.l.b16 %v169
    %v246 = vunpack.c.l.b16 %v170
    %v247 = vunpack.c.h.b16 %v170
    %v248 = vunpack.c.l.b16 %v171
    %v249 = vunpack.c.l.b16 %v172
    %v250 = vunpack.c.h.b16 %v172
    %v251 = vunpack.c.l.b16 %v173
    %v252 = vunpack.c.l.b16 %v174
    %v253 = vunpack.c.h.b16 %v174
    %v254 = vunpack.c.l.b16 %v175
    %v255 = vunpack.c.l.b16 %v176
    %v256 = vunpack.c.h.b16 %v176
    %v257 = vunpack.c.l.b16 %v177
    %v258 = vunpack.c.l.b16 %v178
    %v259 = vunpack.c.h.b16 %v178
    %v260 = vunpack.c.l.b16 %v179
    %v261 = vunpack.c.l.b16 %v180
    %v262 = vunpack.c.h.b16 %v180
    %v263 = vunpack.c.l.b16 %v181
    %v264 = vunpack.c.l.b16 %v182
    %v265 = vunpack.c.h.b16 %v182
    %v266 = vunpack.c.l.b16 %v183
    %v267 = vunpack.c.l.b16 %v184
    %v268 = vunpack.c.h.b16 %v184
    %v269 = vunpack.c.l.b16 %v185
    %v270 = vunpack.c.l.b16 %v186
    %v271 = vunpack.c.h.b16 %v186
    %v272 = vunpack.c.l.b16 %v187
    %v273 = vunpack.c.l.b16 %v188
    %v274 = vunpack.c.h.b16 %v188
    %v275 = vunpack.c.l.b16 %v189
    %v276 = vunpack.c.l.b16 %v190
    %v277 = vunpack.c.h.b16 %v190
    %v278 = vunpack.c.l.b16 %v191
    %v279 = vunpack.c.l.b16 %v192
    %v280 = vunpack.c.h.b16 %v192
    %v281 = vunpack.c.l.b16 %v193
    %v282 = vpack.c.b16 %v237, %v234
    %v283 = vpack.c.b16 %v238, %v235
    %v284 = vpack.c.b16 %v239, %v236
    %v285 = vpack.c.b16 %v243, %v240
    %v286 = vpack.c.b16 %v244, %v241
    %v287 = vpack.c.b16 %v245, %v242
    %v288 = vpack.c.b16 %v249, %v246
    %v289 = vpack.c.b16 %v250, %v247
    %v290 = vpack.c.b16 %v251, %v248
    %v291 = vpack.c.b16 %v255, %v252
    %v292 = vpack.c.b16 %v256, %v253
    %v293 = vpack.c.b16 %v257, %v254
    %v294 = vpack.c.b16 %v261, %v258
    %v295 = vpack.c.b16 %v262, %v259
    %v296 = vpack.c.b16 %v263, %v260
    %v297 = vpack.c.b16 %v267, %v264
    %v298 = vpack.c.b16 %v268, %v265
    %v299 = vpack.c.b16 %v269, %v266
    %v300 = vpack.c.b16 %v273, %v270
    %v301 = vpack.c.b16 %v274, %v271
    %v302 = vpack.c.b16 %v275, %v272
    %v303 = vpack.c.b16 %v279, %v276
    %v304 = vpack.c.b16 %v280, %v277
    %v305 = vpack.c.b16 %v281, %v278
    %330 = vmatpush.bf16.msra.mxu0 %v303
    %331 = vmatpush.bf16.msra.mxu0 %v300
    %332 = vmatpush.bf16.msra.mxu0 %v297
    %333 = vmatpush.bf16.msra.mxu0 %v294
    %334 = vmatpush.bf16.msra.mxu0 %v291
    %335 = vmatpush.bf16.msra.mxu0 %v288
    %336 = vmatpush.bf16.msra.mxu0 %v285
    %337 = vmatpush.bf16.msra.mxu0 %v282
    %338 = vmatmul.bf16.gmra.mxu0 %v161
    %v339 = vpop.f32.mrf.mxu0
    %v340 = vadd.f32 %v196, %v339
    %v341 = vpop.f32.mrf.mxu0
    %342 = vdwg.mxu0
    %343 = vmatpush.bf16.msra.mxu0 %v304
    %344 = vmatpush.bf16.msra.mxu0 %v301
    %345 = vmatpush.bf16.msra.mxu0 %v298
    %346 = vmatpush.bf16.msra.mxu0 %v295
    %347 = vmatpush.bf16.msra.mxu0 %v292
    %348 = vmatpush.bf16.msra.mxu0 %v289
    %349 = vmatpush.bf16.msra.mxu0 %v286
    %350 = vmatpush.bf16.msra.mxu0 %v283
    %351 = vmatmul.bf16.gmra.mxu0 %v161
    %v352 = vpop.f32.mrf.mxu0
    %v353 = vadd.f32 %v197, %v352
    %v354 = vpop.f32.mrf.mxu0
    %355 = vdwg.mxu0
    %356 = vmatpush.bf16.msra.mxu0 %v305
    %357 = vmatpush.bf16.msra.mxu0 %v302
    %358 = vmatpush.bf16.msra.mxu0 %v299
    %359 = vmatpush.bf16.msra.mxu0 %v296
    %360 = vmatpush.bf16.msra.mxu0 %v293
    %361 = vmatpush.bf16.msra.mxu0 %v290
    %362 = vmatpush.bf16.msra.mxu0 %v287
    %363 = vmatpush.bf16.msra.mxu0 %v284
    %364 = vmatmul.bf16.gmra.mxu0 %v161
    %v365 = vpop.f32.mrf.mxu0
    %v366 = vadd.f32 %v198, %v365
    %v367 = vpop.f32.mrf.mxu0
    %368 = vdwg.mxu0
    %v369 = vxor.u32 %v340, 2147483648
    %v370 = vmul.f32 %v369, 1.442695
    %v371 = vpow.pop %v370
    %v372 = vadd.f32 %v371, 1.0
    %v373 = vrcp.pop %v372
    %v374 = vmul.f32 %v372, %v373
    %v375 = vsub.f32 1.0, %v374
    %v376 = vmul.f32 %v373, %v375
    %v377 = vadd.f32 %v373, %v376
    %vm378 = vweird.f32 %v372
    %vm379 = vweird.f32 %v373
    %vm380 = vmor %vm378, %vm379
    %v381 = vsel %vm380, %v373, %v377
    %v382 = vand.u32 2147483647, %v372
    %vm383 = vcmp.eq.f32.partialorder %v382, 8.507059e+37
    %v384 = vand.u32 %v372, 2147483648
    %v385 = vor.u32 1.1754944e-38, %v384
    %v386 = vsel %vm383, %v385, %v381
    %v387 = vmul.f32 1.0, %v386
    %v388 = vtanh.pop %v353
    %v389 = vxor.u32 %v366, 2147483648
    %v390 = vmul.f32 %v389, 1.442695
    %v391 = vpow.pop %v390
    %v392 = vadd.f32 %v391, 1.0
    %v393 = vrcp.pop %v392
    %v394 = vmul.f32 %v392, %v393
    %v395 = vsub.f32 1.0, %v394
    %v396 = vmul.f32 %v393, %v395
    %v397 = vadd.f32 %v393, %v396
    %vm398 = vweird.f32 %v392
    %vm399 = vweird.f32 %v393
    %vm400 = vmor %vm398, %vm399
    %v401 = vsel %vm400, %v393, %v397
    %v402 = vand.u32 2147483647, %v392
    %vm403 = vcmp.eq.f32.partialorder %v402, 8.507059e+37
    %v404 = vand.u32 %v392, 2147483648
    %v405 = vor.u32 1.1754944e-38, %v404
    %v406 = vsel %vm403, %v405, %v401
    %v407 = vmul.f32 1.0, %v406
    %v408 = vmul.f32 %v387, %v388
    %v409 = vtanh.pop %v408
    %v410 = vmul.f32 %v407, %v409
    %v411 = vpack.c.bf16 %v410, %v410
    %v412 = vld [vmem:[#allocation8] sm:$0xff]
    %v413 = vld [vmem:[#allocation8 + $0x8] sm:$0xf]
    %v414 = vld [vmem:[#allocation8 + $0xc] sm:$0xff]
    %v415 = vld [vmem:[#allocation8 + $0x14] sm:$0xf]
    %v416 = vld [vmem:[#allocation8 + $0x18] sm:$0xff]
    %v417 = vld [vmem:[#allocation8 + $0x20] sm:$0xf]
    %v418 = vld [vmem:[#allocation8 + $0x24] sm:$0xff]
    %v419 = vld [vmem:[#allocation8 + $0x2c] sm:$0xf]
    %v420 = vld [vmem:[#allocation8 + $0x30] sm:$0xff]
    %v421 = vld [vmem:[#allocation8 + $0x38] sm:$0xf]
    %v422 = vld [vmem:[#allocation8 + $0x3c] sm:$0xff]
    %v423 = vld [vmem:[#allocation8 + $0x44] sm:$0xf]
    %v424 = vld [vmem:[#allocation8 + $0x48] sm:$0xff]
    %v425 = vld [vmem:[#allocation8 + $0x50] sm:$0xf]
    %v426 = vld [vmem:[#allocation8 + $0x54] sm:$0xff]
    %v427 = vld [vmem:[#allocation8 + $0x5c] sm:$0xf]
    %v428 = vld [vmem:[#allocation8 + $0x60] sm:$0xff]
    %v429 = vld [vmem:[#allocation8 + $0x68] sm:$0xf]
    %v430 = vld [vmem:[#allocation8 + $0x6c] sm:$0xff]
    %v431 = vld [vmem:[#allocation8 + $0x74] sm:$0xf]
    %v432 = vld [vmem:[#allocation8 + $0x78] sm:$0xff]
    %v433 = vld [vmem:[#allocation8 + $0x80] sm:$0xf]
    %v434 = vld [vmem:[#allocation8 + $0x84] sm:$0xff]
    %v435 = vld [vmem:[#allocation8 + $0x8c] sm:$0xf]
    %v436 = vld [vmem:[#allocation8 + $0x90] sm:$0xff]
    %v437 = vld [vmem:[#allocation8 + $0x98] sm:$0xf]
    %v438 = vld [vmem:[#allocation8 + $0x9c] sm:$0xff]
    %v439 = vld [vmem:[#allocation8 + $0xa4] sm:$0xf]
    %v440 = vld [vmem:[#allocation8 + $0xa8] sm:$0xff]
    %v441 = vld [vmem:[#allocation8 + $0xb0] sm:$0xf]
    %v442 = vld [vmem:[#allocation8 + $0xb4] sm:$0xff]
    %v443 = vld [vmem:[#allocation8 + $0xbc] sm:$0xf]
    %v444 = vld [vmem:[%s4] sm:$0x7]
    %v446 = vperm.slane %v444, 0
    %v447 = vperm.slane %v444, 1
    %v448 = vperm.slane %v444, 2
    %v484 = vunpack.c.l.b16 %v412
    %v485 = vunpack.c.h.b16 %v412
    %v486 = vunpack.c.l.b16 %v413
    %v487 = vunpack.c.l.b16 %v414
    %v488 = vunpack.c.h.b16 %v414
    %v489 = vunpack.c.l.b16 %v415
    %v490 = vunpack.c.l.b16 %v416
    %v491 = vunpack.c.h.b16 %v416
    %v492 = vunpack.c.l.b16 %v417
    %v493 = vunpack.c.l.b16 %v418
    %v494 = vunpack.c.h.b16 %v418
    %v495 = vunpack.c.l.b16 %v419
    %v496 = vunpack.c.l.b16 %v420
    %v497 = vunpack.c.h.b16 %v420
    %v498 = vunpack.c.l.b16 %v421
    %v499 = vunpack.c.l.b16 %v422
    %v500 = vunpack.c.h.b16 %v422
    %v501 = vunpack.c.l.b16 %v423
    %v502 = vunpack.c.l.b16 %v424
    %v503 = vunpack.c.h.b16 %v424
    %v504 = vunpack.c.l.b16 %v425
    %v505 = vunpack.c.l.b16 %v426
    %v506 = vunpack.c.h.b16 %v426
    %v507 = vunpack.c.l.b16 %v427
    %v508 = vunpack.c.l.b16 %v428
    %v509 = vunpack.c.h.b16 %v428
    %v510 = vunpack.c.l.b16 %v429
    %v511 = vunpack.c.l.b16 %v430
    %v512 = vunpack.c.h.b16 %v430
    %v513 = vunpack.c.l.b16 %v431
    %v514 = vunpack.c.l.b16 %v432
    %v515 = vunpack.c.h.b16 %v432
    %v516 = vunpack.c.l.b16 %v433
    %v517 = vunpack.c.l.b16 %v434
    %v518 = vunpack.c.h.b16 %v434
    %v519 = vunpack.c.l.b16 %v435
    %v520 = vunpack.c.l.b16 %v436
    %v521 = vunpack.c.h.b16 %v436
    %v522 = vunpack.c.l.b16 %v437
    %v523 = vunpack.c.l.b16 %v438
    %v524 = vunpack.c.h.b16 %v438
    %v525 = vunpack.c.l.b16 %v439
    %v526 = vunpack.c.l.b16 %v440
    %v527 = vunpack.c.h.b16 %v440
    %v528 = vunpack.c.l.b16 %v441
    %v529 = vunpack.c.l.b16 %v442
    %v530 = vunpack.c.h.b16 %v442
    %v531 = vunpack.c.l.b16 %v443
    %v532 = vpack.c.b16 %v487, %v484
    %v533 = vpack.c.b16 %v488, %v485
    %v534 = vpack.c.b16 %v489, %v486
    %v535 = vpack.c.b16 %v493, %v490
    %v536 = vpack.c.b16 %v494, %v491
    %v537 = vpack.c.b16 %v495, %v492
    %v538 = vpack.c.b16 %v499, %v496
    %v539 = vpack.c.b16 %v500, %v497
    %v540 = vpack.c.b16 %v501, %v498
    %v541 = vpack.c.b16 %v505, %v502
    %v542 = vpack.c.b16 %v506, %v503
    %v543 = vpack.c.b16 %v507, %v504
    %v544 = vpack.c.b16 %v511, %v508
    %v545 = vpack.c.b16 %v512, %v509
    %v546 = vpack.c.b16 %v513, %v510
    %v547 = vpack.c.b16 %v517, %v514
    %v548 = vpack.c.b16 %v518, %v515
    %v549 = vpack.c.b16 %v519, %v516
    %v550 = vpack.c.b16 %v523, %v520
    %v551 = vpack.c.b16 %v524, %v521
    %v552 = vpack.c.b16 %v525, %v522
    %v553 = vpack.c.b16 %v529, %v526
    %v554 = vpack.c.b16 %v530, %v527
    %v555 = vpack.c.b16 %v531, %v528
    %580 = vmatpush.bf16.msra.mxu0 %v553
    %581 = vmatpush.bf16.msra.mxu0 %v550
    %582 = vmatpush.bf16.msra.mxu0 %v547
    %583 = vmatpush.bf16.msra.mxu0 %v544
    %584 = vmatpush.bf16.msra.mxu0 %v541
    %585 = vmatpush.bf16.msra.mxu0 %v538
    %586 = vmatpush.bf16.msra.mxu0 %v535
    %587 = vmatpush.bf16.msra.mxu0 %v532
    %588 = vmatmul.bf16.gmra.mxu0 %v411
    %v589 = vpop.f32.mrf.mxu0
    %v590 = vadd.f32 %v446, %v589
    %v591 = vpop.f32.mrf.mxu0
    %592 = vdwg.mxu0
    %593 = vmatpush.bf16.msra.mxu0 %v554
    %594 = vmatpush.bf16.msra.mxu0 %v551
    %595 = vmatpush.bf16.msra.mxu0 %v548
    %596 = vmatpush.bf16.msra.mxu0 %v545
    %597 = vmatpush.bf16.msra.mxu0 %v542
    %598 = vmatpush.bf16.msra.mxu0 %v539
    %599 = vmatpush.bf16.msra.mxu0 %v536
    %600 = vmatpush.bf16.msra.mxu0 %v533
    %601 = vmatmul.bf16.gmra.mxu0 %v411
    %v602 = vpop.f32.mrf.mxu0
    %v603 = vadd.f32 %v447, %v602
    %v604 = vpop.f32.mrf.mxu0
    %605 = vdwg.mxu0
    %606 = vmatpush.bf16.msra.mxu0 %v555
    %607 = vmatpush.bf16.msra.mxu0 %v552
    %608 = vmatpush.bf16.msra.mxu0 %v549
    %609 = vmatpush.bf16.msra.mxu0 %v546
    %610 = vmatpush.bf16.msra.mxu0 %v543
    %611 = vmatpush.bf16.msra.mxu0 %v540
    %612 = vmatpush.bf16.msra.mxu0 %v537
    %613 = vmatpush.bf16.msra.mxu0 %v534
    %614 = vmatmul.bf16.gmra.mxu0 %v411
    %v615 = vpop.f32.mrf.mxu0
    %v616 = vadd.f32 %v448, %v615
    %v617 = vpop.f32.mrf.mxu0
    %618 = vdwg.mxu0
    %v619 = vxor.u32 %v590, 2147483648
    %v620 = vmul.f32 %v619, 1.442695
    %v621 = vpow.pop %v620
    %v622 = vadd.f32 %v621, 1.0
    %v623 = vrcp.pop %v622
    %v624 = vmul.f32 %v622, %v623
    %v625 = vsub.f32 1.0, %v624
    %v626 = vmul.f32 %v623, %v625
    %v627 = vadd.f32 %v623, %v626
    %vm628 = vweird.f32 %v622
    %vm629 = vweird.f32 %v623
    %vm630 = vmor %vm628, %vm629
    %v631 = vsel %vm630, %v623, %v627
    %v632 = vand.u32 2147483647, %v622
    %vm633 = vcmp.eq.f32.partialorder %v632, 8.507059e+37
    %v634 = vand.u32 %v622, 2147483648
    %v635 = vor.u32 1.1754944e-38, %v634
    %v636 = vsel %vm633, %v635, %v631
    %v637 = vmul.f32 1.0, %v636
    %v638 = vtanh.pop %v603
    %v639 = vxor.u32 %v616, 2147483648
    %v640 = vmul.f32 %v639, 1.442695
    %v641 = vpow.pop %v640
    %v642 = vadd.f32 %v641, 1.0
    %v643 = vrcp.pop %v642
    %v644 = vmul.f32 %v642, %v643
    %v645 = vsub.f32 1.0, %v644
    %v646 = vmul.f32 %v643, %v645
    %v647 = vadd.f32 %v643, %v646
    %vm648 = vweird.f32 %v642
    %vm649 = vweird.f32 %v643
    %vm650 = vmor %vm648, %vm649
    %v651 = vsel %vm650, %v643, %v647
    %v652 = vand.u32 2147483647, %v642
    %vm653 = vcmp.eq.f32.partialorder %v652, 8.507059e+37
    %v654 = vand.u32 %v642, 2147483648
    %v655 = vor.u32 1.1754944e-38, %v654
    %v656 = vsel %vm653, %v655, %v651
    %v657 = vmul.f32 1.0, %v656
    %v658 = vmul.f32 %v637, %v638
    %v659 = vtanh.pop %v658
    %v660 = vmul.f32 %v657, %v659
    %v661 = vadd.f32 %v160, %v660
    %v662 = vmul.f32 %v661, 2.0
    %v663 = vlaneseq
    %v664 = vand.u32 %v663, 127
    %vm665 = vcmp.lt.s32.totalorder %v664, 100
    %666 = vadd.xlane.f32.xlu0 %v662
    %v667 = vpop.xlane.xlu0 %666
    %v668 = vmul.f32 %v667, 0.01
    %v669 = vsub.f32 %v662, %v668
    %v670 = vsel %vm665, %v669, 0.0
    %v671 = vmul.f32 %v670, %v670
    %672 = vadd.xlane.f32.xlu0 %v671
    %v673 = vpop.xlane.xlu0 %672
    %v674 = vmul.f32 %v673, 0.01
    %v675 = vadd.f32 %v674, 1e-05
    %v676 = vrsqrt.pop %v675
    %v677 = vmul.f32 %v676, %v675
    %v678 = vmul.f32 %v677, %v676
    %v679 = vmul.f32 0.5, %v678
    %v680 = vsub.f32 1.5, %v679
    %v681 = vmul.f32 %v676, %v680
    %vm682 = vweird.f32 %v675
    %vm683 = vweird.f32 %v676
    %vm684 = vmor %vm682, %vm683
    %v685 = vsel %vm684, %v676, %v681
    %v686 = vmul.f32 %v670, %v685
    %v687 = vld [vmem:[%s5] sm:$0x1]
    %v689 = vperm.slane %v687, 0
    %v691 = vmul.f32 %v686, %v689
    %v692 = vld [vmem:[%s6] sm:$0x1]
    %v694 = vperm.slane %v692, 0
    %v696 = vadd.f32 %v691, %v694
    %v697 = vxor.u32 %v696, 2147483648
    %v698 = vmul.f32 %v697, 1.442695
    %v699 = vpow.pop %v698
    %v700 = vadd.f32 %v699, 1.0
    %v701 = vrcp.pop %v700
    %v702 = vmul.f32 %v700, %v701
    %v703 = vsub.f32 1.0, %v702
    %v704 = vmul.f32 %v701, %v703
    %v705 = vadd.f32 %v701, %v704
    %vm706 = vweird.f32 %v700
    %vm707 = vweird.f32 %v701
    %vm708 = vmor %vm706, %vm707
    %v709 = vsel %vm708, %v701, %v705
    %v710 = vand.u32 2147483647, %v700
    %vm711 = vcmp.eq.f32.partialorder %v710, 8.507059e+37
    %v712 = vand.u32 %v700, 2147483648
    %v713 = vor.u32 1.1754944e-38, %v712
    %v714 = vsel %vm711, %v713, %v709
    %v715 = vmul.f32 1.0, %v714
    %v716 = vmul.f32 %v696, %v715
    %v717 = vpack.c.bf16 %v716, %v716
    %v718 = vld [vmem:[#allocation10] sm:$0xf]
    %v719 = vld [vmem:[#allocation10 + $0x4] sm:$0xf]
    %v720 = vld [vmem:[#allocation10 + $0x8] sm:$0xf]
    %v721 = vld [vmem:[#allocation10 + $0xc] sm:$0xf]
    %v722 = vld [vmem:[#allocation10 + $0x10] sm:$0xf]
    %v723 = vld [vmem:[#allocation10 + $0x14] sm:$0xf]
    %v724 = vld [vmem:[#allocation10 + $0x18] sm:$0xf]
    %v725 = vld [vmem:[#allocation10 + $0x1c] sm:$0xf]
    %v726 = vld [vmem:[#allocation10 + $0x20] sm:$0xf]
    %v727 = vld [vmem:[#allocation10 + $0x24] sm:$0xf]
    %v728 = vld [vmem:[#allocation10 + $0x28] sm:$0xf]
    %v729 = vld [vmem:[#allocation10 + $0x2c] sm:$0xf]
    %v730 = vld [vmem:[#allocation10 + $0x30] sm:$0xf]
    %v731 = vld [vmem:[#allocation10 + $0x34] sm:$0xf]
    %v732 = vld [vmem:[#allocation10 + $0x38] sm:$0xf]
    %v733 = vld [vmem:[#allocation10 + $0x3c] sm:$0xf]
    %v734 = vsub.f32 %v696, -2.2
    %v735 = vmul.f32 %v734, 2.5
    %v736 = vfloor.f32 %v735
    %v737 = vsub.f32 %v735, %v736
    %v738 = vmul.f32 %v737, %v737
    %v739 = vmul.f32 %v738, %v737
    %v740 = vsub.f32 1.0, %v737
    %v741 = vmul.f32 %v740, %v740
    %v742 = vmul.f32 %v741, %v740
    %v743 = vmul.f32 %v742, 0.16666667
    %v744 = vmul.f32 %v739, 0.5
    %v745 = vsub.f32 %v744, %v738
    %v746 = vadd.f32 %v745, 0.6666667
    %v747 = vmul.f32 %v739, -0.5
    %v748 = vmul.f32 %v738, 0.5
    %v749 = vadd.f32 %v747, %v748
    %v750 = vmul.f32 %v737, 0.5
    %v751 = vadd.f32 %v749, %v750
    %v752 = vadd.f32 %v751, 0.16666667
    %v753 = vmul.f32 %v739, 0.16666667
    %vm754 = vcmp.eq.f32.partialorder %v736, 0.0
    %v755 = vsel %vm754, %v753, 0.0
    %vm756 = vcmp.eq.f32.partialorder %v736, 1.0
    %v757 = vsel %vm756, %v752, 0.0
    %v758 = vadd.f32 %v755, %v757
    %vm759 = vcmp.eq.f32.partialorder %v736, 2.0
    %v760 = vsel %vm759, %v746, 0.0
    %v761 = vadd.f32 %v758, %v760
    %vm762 = vcmp.eq.f32.partialorder %v736, 3.0
    %v763 = vsel %vm762, %v743, 0.0
    %v764 = vadd.f32 %v761, %v763
    %v765 = vsel %vm756, %v753, 0.0
    %v766 = vsel %vm759, %v752, 0.0
    %v767 = vadd.f32 %v765, %v766
    %v768 = vsel %vm762, %v746, 0.0
    %v769 = vadd.f32 %v767, %v768
    %vm770 = vcmp.eq.f32.partialorder %v736, 4.0
    %v771 = vsel %vm770, %v743, 0.0
    %v772 = vadd.f32 %v769, %v771
    %v773 = vsel %vm759, %v753, 0.0
    %v774 = vsel %vm762, %v752, 0.0
    %v775 = vadd.f32 %v773, %v774
    %v776 = vsel %vm770, %v746, 0.0
    %v777 = vadd.f32 %v775, %v776
    %vm778 = vcmp.eq.f32.partialorder %v736, 5.0
    %v779 = vsel %vm778, %v743, 0.0
    %v780 = vadd.f32 %v777, %v779
    %v781 = vsel %vm762, %v753, 0.0
    %v782 = vsel %vm770, %v752, 0.0
    %v783 = vadd.f32 %v781, %v782
    %v784 = vsel %vm778, %v746, 0.0
    %v785 = vadd.f32 %v783, %v784
    %vm786 = vcmp.eq.f32.partialorder %v736, 6.0
    %v787 = vsel %vm786, %v743, 0.0
    %v788 = vadd.f32 %v785, %v787
    %v789 = vsel %vm770, %v753, 0.0
    %v790 = vsel %vm778, %v752, 0.0
    %v791 = vadd.f32 %v789, %v790
    %v792 = vsel %vm786, %v746, 0.0
    %v793 = vadd.f32 %v791, %v792
    %vm794 = vcmp.eq.f32.partialorder %v736, 7.0
    %v795 = vsel %vm794, %v743, 0.0
    %v796 = vadd.f32 %v793, %v795
    %v797 = vsel %vm778, %v753, 0.0
    %v798 = vsel %vm786, %v752, 0.0
    %v799 = vadd.f32 %v797, %v798
    %v800 = vsel %vm794, %v746, 0.0
    %v801 = vadd.f32 %v799, %v800
    %vm802 = vcmp.eq.f32.partialorder %v736, 8.0
    %v803 = vsel %vm802, %v743, 0.0
    %v804 = vadd.f32 %v801, %v803
    %v805 = vsel %vm786, %v753, 0.0
    %v806 = vsel %vm794, %v752, 0.0
    %v807 = vadd.f32 %v805, %v806
    %v808 = vsel %vm802, %v746, 0.0
    %v809 = vadd.f32 %v807, %v808
    %vm810 = vcmp.eq.f32.partialorder %v736, 9.0
    %v811 = vsel %vm810, %v743, 0.0
    %v812 = vadd.f32 %v809, %v811
    %v813 = vsel %vm794, %v753, 0.0
    %v814 = vsel %vm802, %v752, 0.0
    %v815 = vadd.f32 %v813, %v814
    %v816 = vsel %vm810, %v746, 0.0
    %v817 = vadd.f32 %v815, %v816
    %vm818 = vcmp.eq.f32.partialorder %v736, 10.0
    %v819 = vsel %vm818, %v743, 0.0
    %v820 = vadd.f32 %v817, %v819
    %v821 = vpack.c.bf16 %v764, %v764
    %v822 = vpack.c.bf16 %v772, %v772
    %v823 = vpack.c.bf16 %v780, %v780
    %v824 = vpack.c.bf16 %v788, %v788
    %v825 = vpack.c.bf16 %v796, %v796
    %v826 = vpack.c.bf16 %v804, %v804
    %v827 = vpack.c.bf16 %v812, %v812
    %v828 = vpack.c.bf16 %v820, %v820
    %v829 = vld [vmem:[#allocation11] sm:$0xf]
    %v830 = vld [vmem:[#allocation11 + $0x4] sm:$0xf]
    %v831 = vld [vmem:[#allocation11 + $0x8] sm:$0xf]
    %v832 = vld [vmem:[#allocation11 + $0xc] sm:$0xf]
    %v833 = vld [vmem:[#allocation11 + $0x10] sm:$0xf]
    %v834 = vld [vmem:[#allocation11 + $0x14] sm:$0xf]
    %v835 = vld [vmem:[#allocation11 + $0x18] sm:$0xf]
    %v836 = vld [vmem:[#allocation11 + $0x1c] sm:$0xf]
    %v837 = vld [vmem:[#allocation11 + $0x20] sm:$0xf]
    %v838 = vld [vmem:[#allocation11 + $0x24] sm:$0xf]
    %v839 = vld [vmem:[#allocation11 + $0x28] sm:$0xf]
    %v840 = vld [vmem:[#allocation11 + $0x2c] sm:$0xf]
    %v841 = vld [vmem:[#allocation11 + $0x30] sm:$0xf]
    %v842 = vld [vmem:[#allocation11 + $0x34] sm:$0xf]
    %v843 = vld [vmem:[#allocation11 + $0x38] sm:$0xf]
    %v844 = vld [vmem:[#allocation11 + $0x3c] sm:$0xf]
    %v845 = vld [vmem:[#allocation11 + $0x40] sm:$0xf]
    %v846 = vld [vmem:[#allocation11 + $0x44] sm:$0xf]
    %v847 = vld [vmem:[#allocation11 + $0x48] sm:$0xf]
    %v848 = vld [vmem:[#allocation11 + $0x4c] sm:$0xf]
    %v849 = vld [vmem:[#allocation11 + $0x50] sm:$0xf]
    %v850 = vld [vmem:[#allocation11 + $0x54] sm:$0xf]
    %v851 = vld [vmem:[#allocation11 + $0x58] sm:$0xf]
    %v852 = vld [vmem:[#allocation11 + $0x5c] sm:$0xf]
    %v853 = vld [vmem:[#allocation11 + $0x60] sm:$0xf]
    %v854 = vld [vmem:[#allocation11 + $0x64] sm:$0xf]
    %v855 = vld [vmem:[#allocation11 + $0x68] sm:$0xf]
    %v856 = vld [vmem:[#allocation11 + $0x6c] sm:$0xf]
    %v857 = vld [vmem:[#allocation11 + $0x70] sm:$0xf]
    %v858 = vld [vmem:[#allocation11 + $0x74] sm:$0xf]
    %v859 = vld [vmem:[#allocation11 + $0x78] sm:$0xf]
    %v860 = vld [vmem:[#allocation11 + $0x7c] sm:$0xf]
    %v861 = vld [vmem:[#allocation11 + $0x80] sm:$0xf]
    %v862 = vld [vmem:[#allocation11 + $0x84] sm:$0xf]
    %v863 = vld [vmem:[#allocation11 + $0x88] sm:$0xf]
    %v864 = vld [vmem:[#allocation11 + $0x8c] sm:$0xf]
    %v865 = vld [vmem:[#allocation11 + $0x90] sm:$0xf]
    %v866 = vld [vmem:[#allocation11 + $0x94] sm:$0xf]
    %v867 = vld [vmem:[#allocation11 + $0x98] sm:$0xf]
    %v868 = vld [vmem:[#allocation11 + $0x9c] sm:$0xf]
    %v869 = vld [vmem:[#allocation11 + $0xa0] sm:$0xf]
    %v870 = vld [vmem:[#allocation11 + $0xa4] sm:$0xf]
    %v871 = vld [vmem:[#allocation11 + $0xa8] sm:$0xf]
    %v872 = vld [vmem:[#allocation11 + $0xac] sm:$0xf]
    %v873 = vld [vmem:[#allocation11 + $0xb0] sm:$0xf]
    %v874 = vld [vmem:[#allocation11 + $0xb4] sm:$0xf]
    %v875 = vld [vmem:[#allocation11 + $0xb8] sm:$0xf]
    %v876 = vld [vmem:[#allocation11 + $0xbc] sm:$0xf]
    %v877 = vld [vmem:[#allocation11 + $0xc0] sm:$0xf]
    %v878 = vld [vmem:[#allocation11 + $0xc4] sm:$0xf]
    %v879 = vld [vmem:[#allocation11 + $0xc8] sm:$0xf]
    %v880 = vld [vmem:[#allocation11 + $0xcc] sm:$0xf]
    %v881 = vld [vmem:[#allocation11 + $0xd0] sm:$0xf]
    %v882 = vld [vmem:[#allocation11 + $0xd4] sm:$0xf]
    %v883 = vld [vmem:[#allocation11 + $0xd8] sm:$0xf]
    %v884 = vld [vmem:[#allocation11 + $0xdc] sm:$0xf]
    %v885 = vld [vmem:[#allocation11 + $0xe0] sm:$0xf]
    %v886 = vld [vmem:[#allocation11 + $0xe4] sm:$0xf]
    %v887 = vld [vmem:[#allocation11 + $0xe8] sm:$0xf]
    %v888 = vld [vmem:[#allocation11 + $0xec] sm:$0xf]
    %v889 = vld [vmem:[#allocation11 + $0xf0] sm:$0xf]
    %v890 = vld [vmem:[#allocation11 + $0xf4] sm:$0xf]
    %v891 = vld [vmem:[#allocation11 + $0xf8] sm:$0xf]
    %v892 = vld [vmem:[#allocation11 + $0xfc] sm:$0xf]
    %v893 = vld [vmem:[#allocation11 + $0x100] sm:$0xf]
    %v894 = vld [vmem:[#allocation11 + $0x104] sm:$0xf]
    %v895 = vld [vmem:[#allocation11 + $0x108] sm:$0xf]
    %v896 = vld [vmem:[#allocation11 + $0x10c] sm:$0xf]
    %v897 = vld [vmem:[#allocation11 + $0x110] sm:$0xf]
    %v898 = vld [vmem:[#allocation11 + $0x114] sm:$0xf]
    %v899 = vld [vmem:[#allocation11 + $0x118] sm:$0xf]
    %v900 = vld [vmem:[#allocation11 + $0x11c] sm:$0xf]
    %v901 = vld [vmem:[#allocation11 + $0x120] sm:$0xf]
    %v902 = vld [vmem:[#allocation11 + $0x124] sm:$0xf]
    %v903 = vld [vmem:[#allocation11 + $0x128] sm:$0xf]
    %v904 = vld [vmem:[#allocation11 + $0x12c] sm:$0xf]
    %v905 = vld [vmem:[#allocation11 + $0x130] sm:$0xf]
    %v906 = vld [vmem:[#allocation11 + $0x134] sm:$0xf]
    %v907 = vld [vmem:[#allocation11 + $0x138] sm:$0xf]
    %v908 = vld [vmem:[#allocation11 + $0x13c] sm:$0xf]
    %v909 = vld [vmem:[#allocation11 + $0x140] sm:$0xf]
    %v910 = vld [vmem:[#allocation11 + $0x144] sm:$0xf]
    %v911 = vld [vmem:[#allocation11 + $0x148] sm:$0xf]
    %v912 = vld [vmem:[#allocation11 + $0x14c] sm:$0xf]
    %v913 = vld [vmem:[#allocation11 + $0x150] sm:$0xf]
    %v914 = vld [vmem:[#allocation11 + $0x154] sm:$0xf]
    %v915 = vld [vmem:[#allocation11 + $0x158] sm:$0xf]
    %v916 = vld [vmem:[#allocation11 + $0x15c] sm:$0xf]
    %v917 = vld [vmem:[#allocation11 + $0x160] sm:$0xf]
    %v918 = vld [vmem:[#allocation11 + $0x164] sm:$0xf]
    %v919 = vld [vmem:[#allocation11 + $0x168] sm:$0xf]
    %v920 = vld [vmem:[#allocation11 + $0x16c] sm:$0xf]
    %v921 = vld [vmem:[#allocation11 + $0x170] sm:$0xf]
    %v922 = vld [vmem:[#allocation11 + $0x174] sm:$0xf]
    %v923 = vld [vmem:[#allocation11 + $0x178] sm:$0xf]
    %v924 = vld [vmem:[#allocation11 + $0x17c] sm:$0xf]
    %v925 = vld [vmem:[#allocation11 + $0x180] sm:$0xf]
    %v926 = vld [vmem:[#allocation11 + $0x184] sm:$0xf]
    %v927 = vld [vmem:[#allocation11 + $0x188] sm:$0xf]
    %v928 = vld [vmem:[#allocation11 + $0x18c] sm:$0xf]
    %v929 = vld [vmem:[#allocation11 + $0x190] sm:$0xf]
    %v930 = vld [vmem:[#allocation11 + $0x194] sm:$0xf]
    %v931 = vld [vmem:[#allocation11 + $0x198] sm:$0xf]
    %v932 = vld [vmem:[#allocation11 + $0x19c] sm:$0xf]
    %v933 = vld [vmem:[#allocation11 + $0x1a0] sm:$0xf]
    %v934 = vld [vmem:[#allocation11 + $0x1a4] sm:$0xf]
    %v935 = vld [vmem:[#allocation11 + $0x1a8] sm:$0xf]
    %v936 = vld [vmem:[#allocation11 + $0x1ac] sm:$0xf]
    %v937 = vld [vmem:[#allocation11 + $0x1b0] sm:$0xf]
    %v938 = vld [vmem:[#allocation11 + $0x1b4] sm:$0xf]
    %v939 = vld [vmem:[#allocation11 + $0x1b8] sm:$0xf]
    %v940 = vld [vmem:[#allocation11 + $0x1bc] sm:$0xf]
    %v941 = vld [vmem:[#allocation11 + $0x1c0] sm:$0xf]
    %v942 = vld [vmem:[#allocation11 + $0x1c4] sm:$0xf]
    %v943 = vld [vmem:[#allocation11 + $0x1c8] sm:$0xf]
    %v944 = vld [vmem:[#allocation11 + $0x1cc] sm:$0xf]
    %v945 = vld [vmem:[#allocation11 + $0x1d0] sm:$0xf]
    %v946 = vld [vmem:[#allocation11 + $0x1d4] sm:$0xf]
    %v947 = vld [vmem:[#allocation11 + $0x1d8] sm:$0xf]
    %v948 = vld [vmem:[#allocation11 + $0x1dc] sm:$0xf]
    %v949 = vld [vmem:[#allocation11 + $0x1e0] sm:$0xf]
    %v950 = vld [vmem:[#allocation11 + $0x1e4] sm:$0xf]
    %v951 = vld [vmem:[#allocation11 + $0x1e8] sm:$0xf]
    %v952 = vld [vmem:[#allocation11 + $0x1ec] sm:$0xf]
    %v953 = vld [vmem:[#allocation11 + $0x1f0] sm:$0xf]
    %v954 = vld [vmem:[#allocation11 + $0x1f4] sm:$0xf]
    %v955 = vld [vmem:[#allocation11 + $0x1f8] sm:$0xf]
    %v956 = vld [vmem:[#allocation11 + $0x1fc] sm:$0xf]
    %v1085 = vunpack.c.l.b16 %v829
    %v1086 = vunpack.c.l.b16 %v830
    %v1087 = vunpack.c.l.b16 %v831
    %v1088 = vunpack.c.l.b16 %v832
    %v1089 = vunpack.c.l.b16 %v833
    %v1090 = vunpack.c.l.b16 %v834
    %v1091 = vunpack.c.l.b16 %v835
    %v1092 = vunpack.c.l.b16 %v836
    %v1093 = vunpack.c.l.b16 %v837
    %v1094 = vunpack.c.l.b16 %v838
    %v1095 = vunpack.c.l.b16 %v839
    %v1096 = vunpack.c.l.b16 %v840
    %v1097 = vunpack.c.l.b16 %v841
    %v1098 = vunpack.c.l.b16 %v842
    %v1099 = vunpack.c.l.b16 %v843
    %v1100 = vunpack.c.l.b16 %v844
    %v1101 = vunpack.c.l.b16 %v845
    %v1102 = vunpack.c.l.b16 %v846
    %v1103 = vunpack.c.l.b16 %v847
    %v1104 = vunpack.c.l.b16 %v848
    %v1105 = vunpack.c.l.b16 %v849
    %v1106 = vunpack.c.l.b16 %v850
    %v1107 = vunpack.c.l.b16 %v851
    %v1108 = vunpack.c.l.b16 %v852
    %v1109 = vunpack.c.l.b16 %v853
    %v1110 = vunpack.c.l.b16 %v854
    %v1111 = vunpack.c.l.b16 %v855
    %v1112 = vunpack.c.l.b16 %v856
    %v1113 = vunpack.c.l.b16 %v857
    %v1114 = vunpack.c.l.b16 %v858
    %v1115 = vunpack.c.l.b16 %v859
    %v1116 = vunpack.c.l.b16 %v860
    %v1117 = vunpack.c.l.b16 %v861
    %v1118 = vunpack.c.l.b16 %v862
    %v1119 = vunpack.c.l.b16 %v863
    %v1120 = vunpack.c.l.b16 %v864
    %v1121 = vunpack.c.l.b16 %v865
    %v1122 = vunpack.c.l.b16 %v866
    %v1123 = vunpack.c.l.b16 %v867
    %v1124 = vunpack.c.l.b16 %v868
    %v1125 = vunpack.c.l.b16 %v869
    %v1126 = vunpack.c.l.b16 %v870
    %v1127 = vunpack.c.l.b16 %v871
    %v1128 = vunpack.c.l.b16 %v872
    %v1129 = vunpack.c.l.b16 %v873
    %v1130 = vunpack.c.l.b16 %v874
    %v1131 = vunpack.c.l.b16 %v875
    %v1132 = vunpack.c.l.b16 %v876
    %v1133 = vunpack.c.l.b16 %v877
    %v1134 = vunpack.c.l.b16 %v878
    %v1135 = vunpack.c.l.b16 %v879
    %v1136 = vunpack.c.l.b16 %v880
    %v1137 = vunpack.c.l.b16 %v881
    %v1138 = vunpack.c.l.b16 %v882
    %v1139 = vunpack.c.l.b16 %v883
    %v1140 = vunpack.c.l.b16 %v884
    %v1141 = vunpack.c.l.b16 %v885
    %v1142 = vunpack.c.l.b16 %v886
    %v1143 = vunpack.c.l.b16 %v887
    %v1144 = vunpack.c.l.b16 %v888
    %v1145 = vunpack.c.l.b16 %v889
    %v1146 = vunpack.c.l.b16 %v890
    %v1147 = vunpack.c.l.b16 %v891
    %v1148 = vunpack.c.l.b16 %v892
    %v1149 = vunpack.c.l.b16 %v893
    %v1150 = vunpack.c.l.b16 %v894
    %v1151 = vunpack.c.l.b16 %v895
    %v1152 = vunpack.c.l.b16 %v896
    %v1153 = vunpack.c.l.b16 %v897
    %v1154 = vunpack.c.l.b16 %v898
    %v1155 = vunpack.c.l.b16 %v899
    %v1156 = vunpack.c.l.b16 %v900
    %v1157 = vunpack.c.l.b16 %v901
    %v1158 = vunpack.c.l.b16 %v902
    %v1159 = vunpack.c.l.b16 %v903
    %v1160 = vunpack.c.l.b16 %v904
    %v1161 = vunpack.c.l.b16 %v905
    %v1162 = vunpack.c.l.b16 %v906
    %v1163 = vunpack.c.l.b16 %v907
    %v1164 = vunpack.c.l.b16 %v908
    %v1165 = vunpack.c.l.b16 %v909
    %v1166 = vunpack.c.l.b16 %v910
    %v1167 = vunpack.c.l.b16 %v911
    %v1168 = vunpack.c.l.b16 %v912
    %v1169 = vunpack.c.l.b16 %v913
    %v1170 = vunpack.c.l.b16 %v914
    %v1171 = vunpack.c.l.b16 %v915
    %v1172 = vunpack.c.l.b16 %v916
    %v1173 = vunpack.c.l.b16 %v917
    %v1174 = vunpack.c.l.b16 %v918
    %v1175 = vunpack.c.l.b16 %v919
    %v1176 = vunpack.c.l.b16 %v920
    %v1177 = vunpack.c.l.b16 %v921
    %v1178 = vunpack.c.l.b16 %v922
    %v1179 = vunpack.c.l.b16 %v923
    %v1180 = vunpack.c.l.b16 %v924
    %v1181 = vunpack.c.l.b16 %v925
    %v1182 = vunpack.c.l.b16 %v926
    %v1183 = vunpack.c.l.b16 %v927
    %v1184 = vunpack.c.l.b16 %v928
    %v1185 = vunpack.c.l.b16 %v929
    %v1186 = vunpack.c.l.b16 %v930
    %v1187 = vunpack.c.l.b16 %v931
    %v1188 = vunpack.c.l.b16 %v932
    %v1189 = vunpack.c.l.b16 %v933
    %v1190 = vunpack.c.l.b16 %v934
    %v1191 = vunpack.c.l.b16 %v935
    %v1192 = vunpack.c.l.b16 %v936
    %v1193 = vunpack.c.l.b16 %v937
    %v1194 = vunpack.c.l.b16 %v938
    %v1195 = vunpack.c.l.b16 %v939
    %v1196 = vunpack.c.l.b16 %v940
    %v1197 = vunpack.c.l.b16 %v941
    %v1198 = vunpack.c.l.b16 %v942
    %v1199 = vunpack.c.l.b16 %v943
    %v1200 = vunpack.c.l.b16 %v944
    %v1201 = vunpack.c.l.b16 %v945
    %v1202 = vunpack.c.l.b16 %v946
    %v1203 = vunpack.c.l.b16 %v947
    %v1204 = vunpack.c.l.b16 %v948
    %v1205 = vunpack.c.l.b16 %v949
    %v1206 = vunpack.c.l.b16 %v950
    %v1207 = vunpack.c.l.b16 %v951
    %v1208 = vunpack.c.l.b16 %v952
    %v1209 = vunpack.c.l.b16 %v953
    %v1210 = vunpack.c.l.b16 %v954
    %v1211 = vunpack.c.l.b16 %v955
    %v1212 = vunpack.c.l.b16 %v956
    %v1213 = vpack.c.b16 %v1086, %v1085
    %v1214 = vpack.c.b16 %v1088, %v1087
    %v1215 = vpack.c.b16 %v1090, %v1089
    %v1216 = vpack.c.b16 %v1092, %v1091
    %v1217 = vpack.c.b16 %v1094, %v1093
    %v1218 = vpack.c.b16 %v1096, %v1095
    %v1219 = vpack.c.b16 %v1098, %v1097
    %v1220 = vpack.c.b16 %v1100, %v1099
    %v1221 = vpack.c.b16 %v1102, %v1101
    %v1222 = vpack.c.b16 %v1104, %v1103
    %v1223 = vpack.c.b16 %v1106, %v1105
    %v1224 = vpack.c.b16 %v1108, %v1107
    %v1225 = vpack.c.b16 %v1110, %v1109
    %v1226 = vpack.c.b16 %v1112, %v1111
    %v1227 = vpack.c.b16 %v1114, %v1113
    %v1228 = vpack.c.b16 %v1116, %v1115
    %v1229 = vpack.c.b16 %v1118, %v1117
    %v1230 = vpack.c.b16 %v1120, %v1119
    %v1231 = vpack.c.b16 %v1122, %v1121
    %v1232 = vpack.c.b16 %v1124, %v1123
    %v1233 = vpack.c.b16 %v1126, %v1125
    %v1234 = vpack.c.b16 %v1128, %v1127
    %v1235 = vpack.c.b16 %v1130, %v1129
    %v1236 = vpack.c.b16 %v1132, %v1131
    %v1237 = vpack.c.b16 %v1134, %v1133
    %v1238 = vpack.c.b16 %v1136, %v1135
    %v1239 = vpack.c.b16 %v1138, %v1137
    %v1240 = vpack.c.b16 %v1140, %v1139
    %v1241 = vpack.c.b16 %v1142, %v1141
    %v1242 = vpack.c.b16 %v1144, %v1143
    %v1243 = vpack.c.b16 %v1146, %v1145
    %v1244 = vpack.c.b16 %v1148, %v1147
    %v1245 = vpack.c.b16 %v1150, %v1149
    %v1246 = vpack.c.b16 %v1152, %v1151
    %v1247 = vpack.c.b16 %v1154, %v1153
    %v1248 = vpack.c.b16 %v1156, %v1155
    %v1249 = vpack.c.b16 %v1158, %v1157
    %v1250 = vpack.c.b16 %v1160, %v1159
    %v1251 = vpack.c.b16 %v1162, %v1161
    %v1252 = vpack.c.b16 %v1164, %v1163
    %v1253 = vpack.c.b16 %v1166, %v1165
    %v1254 = vpack.c.b16 %v1168, %v1167
    %v1255 = vpack.c.b16 %v1170, %v1169
    %v1256 = vpack.c.b16 %v1172, %v1171
    %v1257 = vpack.c.b16 %v1174, %v1173
    %v1258 = vpack.c.b16 %v1176, %v1175
    %v1259 = vpack.c.b16 %v1178, %v1177
    %v1260 = vpack.c.b16 %v1180, %v1179
    %v1261 = vpack.c.b16 %v1182, %v1181
    %v1262 = vpack.c.b16 %v1184, %v1183
    %v1263 = vpack.c.b16 %v1186, %v1185
    %v1264 = vpack.c.b16 %v1188, %v1187
    %v1265 = vpack.c.b16 %v1190, %v1189
    %v1266 = vpack.c.b16 %v1192, %v1191
    %v1267 = vpack.c.b16 %v1194, %v1193
    %v1268 = vpack.c.b16 %v1196, %v1195
    %v1269 = vpack.c.b16 %v1198, %v1197
    %v1270 = vpack.c.b16 %v1200, %v1199
    %v1271 = vpack.c.b16 %v1202, %v1201
    %v1272 = vpack.c.b16 %v1204, %v1203
    %v1273 = vpack.c.b16 %v1206, %v1205
    %v1274 = vpack.c.b16 %v1208, %v1207
    %v1275 = vpack.c.b16 %v1210, %v1209
    %v1276 = vpack.c.b16 %v1212, %v1211
    %1341 = vmatpush.bf16.msra.mxu0 %v1220
    %1342 = vmatpush.bf16.msra.mxu0 %v1219
    %1343 = vmatpush.bf16.msra.mxu0 %v1218
    %1344 = vmatpush.bf16.msra.mxu0 %v1217
    %1345 = vmatpush.bf16.msra.mxu0 %v1216
    %1346 = vmatpush.bf16.msra.mxu0 %v1215
    %1347 = vmatpush.bf16.msra.mxu0 %v1214
    %1348 = vmatpush.bf16.msra.mxu0 %v1213
    %1349 = vmatmul.bf16.gmra.mxu0 %v821
    %v1350 = vpop.f32.mrf.mxu0
    %v1351 = vadd.f32 0.0, %v1350
    %v1352 = vpop.f32.mrf.mxu0
    %1353 = vdwg.mxu0
    %1354 = vmatpush.bf16.msra.mxu0 %v1228
    %1355 = vmatpush.bf16.msra.mxu0 %v1227
    %1356 = vmatpush.bf16.msra.mxu0 %v1226
    %1357 = vmatpush.bf16.msra.mxu0 %v1225
    %1358 = vmatpush.bf16.msra.mxu0 %v1224
    %1359 = vmatpush.bf16.msra.mxu0 %v1223
    %1360 = vmatpush.bf16.msra.mxu0 %v1222
    %1361 = vmatpush.bf16.msra.mxu0 %v1221
    %1362 = vmatmul.bf16.gmra.mxu0 %v822
    %v1363 = vpop.f32.mrf.mxu0
    %v1364 = vadd.f32 %v1351, %v1363
    %v1365 = vpop.f32.mrf.mxu0
    %1366 = vdwg.mxu0
    %1367 = vmatpush.bf16.msra.mxu0 %v1236
    %1368 = vmatpush.bf16.msra.mxu0 %v1235
    %1369 = vmatpush.bf16.msra.mxu0 %v1234
    %1370 = vmatpush.bf16.msra.mxu0 %v1233
    %1371 = vmatpush.bf16.msra.mxu0 %v1232
    %1372 = vmatpush.bf16.msra.mxu0 %v1231
    %1373 = vmatpush.bf16.msra.mxu0 %v1230
    %1374 = vmatpush.bf16.msra.mxu0 %v1229
    %1375 = vmatmul.bf16.gmra.mxu0 %v823
    %v1376 = vpop.f32.mrf.mxu0
    %v1377 = vadd.f32 %v1364, %v1376
    %v1378 = vpop.f32.mrf.mxu0
    %1379 = vdwg.mxu0
    %1380 = vmatpush.bf16.msra.mxu0 %v1244
    %1381 = vmatpush.bf16.msra.mxu0 %v1243
    %1382 = vmatpush.bf16.msra.mxu0 %v1242
    %1383 = vmatpush.bf16.msra.mxu0 %v1241
    %1384 = vmatpush.bf16.msra.mxu0 %v1240
    %1385 = vmatpush.bf16.msra.mxu0 %v1239
    %1386 = vmatpush.bf16.msra.mxu0 %v1238
    %1387 = vmatpush.bf16.msra.mxu0 %v1237
    %1388 = vmatmul.bf16.gmra.mxu0 %v824
    %v1389 = vpop.f32.mrf.mxu0
    %v1390 = vadd.f32 %v1377, %v1389
    %v1391 = vpop.f32.mrf.mxu0
    %1392 = vdwg.mxu0
    %1393 = vmatpush.bf16.msra.mxu0 %v1252
    %1394 = vmatpush.bf16.msra.mxu0 %v1251
    %1395 = vmatpush.bf16.msra.mxu0 %v1250
    %1396 = vmatpush.bf16.msra.mxu0 %v1249
    %1397 = vmatpush.bf16.msra.mxu0 %v1248
    %1398 = vmatpush.bf16.msra.mxu0 %v1247
    %1399 = vmatpush.bf16.msra.mxu0 %v1246
    %1400 = vmatpush.bf16.msra.mxu0 %v1245
    %1401 = vmatmul.bf16.gmra.mxu0 %v825
    %v1402 = vpop.f32.mrf.mxu0
    %v1403 = vadd.f32 %v1390, %v1402
    %v1404 = vpop.f32.mrf.mxu0
    %1405 = vdwg.mxu0
    %1406 = vmatpush.bf16.msra.mxu0 %v1260
    %1407 = vmatpush.bf16.msra.mxu0 %v1259
    %1408 = vmatpush.bf16.msra.mxu0 %v1258
    %1409 = vmatpush.bf16.msra.mxu0 %v1257
    %1410 = vmatpush.bf16.msra.mxu0 %v1256
    %1411 = vmatpush.bf16.msra.mxu0 %v1255
    %1412 = vmatpush.bf16.msra.mxu0 %v1254
    %1413 = vmatpush.bf16.msra.mxu0 %v1253
    %1414 = vmatmul.bf16.gmra.mxu0 %v826
    %v1415 = vpop.f32.mrf.mxu0
    %v1416 = vadd.f32 %v1403, %v1415
    %v1417 = vpop.f32.mrf.mxu0
    %1418 = vdwg.mxu0
    %1419 = vmatpush.bf16.msra.mxu0 %v1268
    %1420 = vmatpush.bf16.msra.mxu0 %v1267
    %1421 = vmatpush.bf16.msra.mxu0 %v1266
    %1422 = vmatpush.bf16.msra.mxu0 %v1265
    %1423 = vmatpush.bf16.msra.mxu0 %v1264
    %1424 = vmatpush.bf16.msra.mxu0 %v1263
    %1425 = vmatpush.bf16.msra.mxu0 %v1262
    %1426 = vmatpush.bf16.msra.mxu0 %v1261
    %1427 = vmatmul.bf16.gmra.mxu0 %v827
    %v1428 = vpop.f32.mrf.mxu0
    %v1429 = vadd.f32 %v1416, %v1428
    %v1430 = vpop.f32.mrf.mxu0
    %1431 = vdwg.mxu0
    %1432 = vmatpush.bf16.msra.mxu0 %v1276
    %1433 = vmatpush.bf16.msra.mxu0 %v1275
    %1434 = vmatpush.bf16.msra.mxu0 %v1274
    %1435 = vmatpush.bf16.msra.mxu0 %v1273
    %1436 = vmatpush.bf16.msra.mxu0 %v1272
    %1437 = vmatpush.bf16.msra.mxu0 %v1271
    %1438 = vmatpush.bf16.msra.mxu0 %v1270
    %1439 = vmatpush.bf16.msra.mxu0 %v1269
    %1440 = vmatmul.bf16.gmra.mxu0 %v828
    %v1441 = vpop.f32.mrf.mxu0
    %v1442 = vadd.f32 %v1429, %v1441
    %v1443 = vpop.f32.mrf.mxu0
    %1444 = vdwg.mxu0
    %v1461 = vunpack.c.l.b16 %v718
    %v1462 = vunpack.c.l.b16 %v719
    %v1463 = vunpack.c.l.b16 %v720
    %v1464 = vunpack.c.l.b16 %v721
    %v1465 = vunpack.c.l.b16 %v722
    %v1466 = vunpack.c.l.b16 %v723
    %v1467 = vunpack.c.l.b16 %v724
    %v1468 = vunpack.c.l.b16 %v725
    %v1469 = vunpack.c.l.b16 %v726
    %v1470 = vunpack.c.l.b16 %v727
    %v1471 = vunpack.c.l.b16 %v728
    %v1472 = vunpack.c.l.b16 %v729
    %v1473 = vunpack.c.l.b16 %v730
    %v1474 = vunpack.c.l.b16 %v731
    %v1475 = vunpack.c.l.b16 %v732
    %v1476 = vunpack.c.l.b16 %v733
    %v1477 = vpack.c.b16 %v1462, %v1461
    %v1478 = vpack.c.b16 %v1464, %v1463
    %v1479 = vpack.c.b16 %v1466, %v1465
    %v1480 = vpack.c.b16 %v1468, %v1467
    %v1481 = vpack.c.b16 %v1470, %v1469
    %v1482 = vpack.c.b16 %v1472, %v1471
    %v1483 = vpack.c.b16 %v1474, %v1473
    %v1484 = vpack.c.b16 %v1476, %v1475
    %1493 = vmatpush.bf16.msra.mxu0 %v1484
    %1494 = vmatpush.bf16.msra.mxu0 %v1483
    %1495 = vmatpush.bf16.msra.mxu0 %v1482
    %1496 = vmatpush.bf16.msra.mxu0 %v1481
    %1497 = vmatpush.bf16.msra.mxu0 %v1480
    %1498 = vmatpush.bf16.msra.mxu0 %v1479
    %1499 = vmatpush.bf16.msra.mxu0 %v1478
    %1500 = vmatpush.bf16.msra.mxu0 %v1477
    %1501 = vmatmul.bf16.gmra.mxu0 %v717
    %v1502 = vpop.f32.mrf.mxu0
    %v1503 = vadd.f32 %v1442, %v1502
    %v1504 = vpop.f32.mrf.mxu0
    %1505 = vdwg.mxu0
    %v1506 = vxor.u32 %v1503, 2147483648
    %v1507 = vmul.f32 %v1506, 1.442695
    %v1508 = vpow.pop %v1507
    %v1509 = vadd.f32 %v1508, 1.0
    %v1510 = vrcp.pop %v1509
    %v1511 = vmul.f32 %v1509, %v1510
    %v1512 = vsub.f32 1.0, %v1511
    %v1513 = vmul.f32 %v1510, %v1512
    %v1514 = vadd.f32 %v1510, %v1513
    %vm1515 = vweird.f32 %v1509
    %vm1516 = vweird.f32 %v1510
    %vm1517 = vmor %vm1515, %vm1516
    %v1518 = vsel %vm1517, %v1510, %v1514
    %v1519 = vand.u32 2147483647, %v1509
    %vm1520 = vcmp.eq.f32.partialorder %v1519, 8.507059e+37
    %v1521 = vand.u32 %v1509, 2147483648
    %v1522 = vor.u32 1.1754944e-38, %v1521
    %v1523 = vsel %vm1520, %v1522, %v1518
    %v1524 = vmul.f32 1.0, %v1523
    %v1525 = vmul.f32 %v1503, %v1524
    %v1526 = vpack.c.bf16 %v1525, %v1525
    %v1527 = vld [vmem:[#allocation13] sm:$0xf]
    %v1528 = vld [vmem:[#allocation13 + $0x4] sm:$0xf]
    %v1529 = vld [vmem:[#allocation13 + $0x8] sm:$0xf]
    %v1530 = vld [vmem:[#allocation13 + $0xc] sm:$0xf]
    %v1531 = vld [vmem:[#allocation13 + $0x10] sm:$0xf]
    %v1532 = vld [vmem:[#allocation13 + $0x14] sm:$0xf]
    %v1533 = vld [vmem:[#allocation13 + $0x18] sm:$0xf]
    %v1534 = vld [vmem:[#allocation13 + $0x1c] sm:$0xf]
    %v1535 = vld [vmem:[#allocation13 + $0x20] sm:$0xf]
    %v1536 = vld [vmem:[#allocation13 + $0x24] sm:$0xf]
    %v1537 = vld [vmem:[#allocation13 + $0x28] sm:$0xf]
    %v1538 = vld [vmem:[#allocation13 + $0x2c] sm:$0xf]
    %v1539 = vld [vmem:[#allocation13 + $0x30] sm:$0xf]
    %v1540 = vld [vmem:[#allocation13 + $0x34] sm:$0xf]
    %v1541 = vld [vmem:[#allocation13 + $0x38] sm:$0xf]
    %v1542 = vld [vmem:[#allocation13 + $0x3c] sm:$0xf]
    %v1543 = vsub.f32 %v1503, -2.2
    %v1544 = vmul.f32 %v1543, 2.5
    %v1545 = vfloor.f32 %v1544
    %v1546 = vsub.f32 %v1544, %v1545
    %v1547 = vmul.f32 %v1546, %v1546
    %v1548 = vmul.f32 %v1547, %v1546
    %v1549 = vsub.f32 1.0, %v1546
    %v1550 = vmul.f32 %v1549, %v1549
    %v1551 = vmul.f32 %v1550, %v1549
    %v1552 = vmul.f32 %v1551, 0.16666667
    %v1553 = vmul.f32 %v1548, 0.5
    %v1554 = vsub.f32 %v1553, %v1547
    %v1555 = vadd.f32 %v1554, 0.6666667
    %v1556 = vmul.f32 %v1548, -0.5
    %v1557 = vmul.f32 %v1547, 0.5
    %v1558 = vadd.f32 %v1556, %v1557
    %v1559 = vmul.f32 %v1546, 0.5
    %v1560 = vadd.f32 %v1558, %v1559
    %v1561 = vadd.f32 %v1560, 0.16666667
    %v1562 = vmul.f32 %v1548, 0.16666667
    %vm1563 = vcmp.eq.f32.partialorder %v1545, 0.0
    %v1564 = vsel %vm1563, %v1562, 0.0
    %vm1565 = vcmp.eq.f32.partialorder %v1545, 1.0
    %v1566 = vsel %vm1565, %v1561, 0.0
    %v1567 = vadd.f32 %v1564, %v1566
    %vm1568 = vcmp.eq.f32.partialorder %v1545, 2.0
    %v1569 = vsel %vm1568, %v1555, 0.0
    %v1570 = vadd.f32 %v1567, %v1569
    %vm1571 = vcmp.eq.f32.partialorder %v1545, 3.0
    %v1572 = vsel %vm1571, %v1552, 0.0
    %v1573 = vadd.f32 %v1570, %v1572
    %v1574 = vsel %vm1565, %v1562, 0.0
    %v1575 = vsel %vm1568, %v1561, 0.0
    %v1576 = vadd.f32 %v1574, %v1575
    %v1577 = vsel %vm1571, %v1555, 0.0
    %v1578 = vadd.f32 %v1576, %v1577
    %vm1579 = vcmp.eq.f32.partialorder %v1545, 4.0
    %v1580 = vsel %vm1579, %v1552, 0.0
    %v1581 = vadd.f32 %v1578, %v1580
    %v1582 = vsel %vm1568, %v1562, 0.0
    %v1583 = vsel %vm1571, %v1561, 0.0
    %v1584 = vadd.f32 %v1582, %v1583
    %v1585 = vsel %vm1579, %v1555, 0.0
    %v1586 = vadd.f32 %v1584, %v1585
    %vm1587 = vcmp.eq.f32.partialorder %v1545, 5.0
    %v1588 = vsel %vm1587, %v1552, 0.0
    %v1589 = vadd.f32 %v1586, %v1588
    %v1590 = vsel %vm1571, %v1562, 0.0
    %v1591 = vsel %vm1579, %v1561, 0.0
    %v1592 = vadd.f32 %v1590, %v1591
    %v1593 = vsel %vm1587, %v1555, 0.0
    %v1594 = vadd.f32 %v1592, %v1593
    %vm1595 = vcmp.eq.f32.partialorder %v1545, 6.0
    %v1596 = vsel %vm1595, %v1552, 0.0
    %v1597 = vadd.f32 %v1594, %v1596
    %v1598 = vsel %vm1579, %v1562, 0.0
    %v1599 = vsel %vm1587, %v1561, 0.0
    %v1600 = vadd.f32 %v1598, %v1599
    %v1601 = vsel %vm1595, %v1555, 0.0
    %v1602 = vadd.f32 %v1600, %v1601
    %vm1603 = vcmp.eq.f32.partialorder %v1545, 7.0
    %v1604 = vsel %vm1603, %v1552, 0.0
    %v1605 = vadd.f32 %v1602, %v1604
    %v1606 = vsel %vm1587, %v1562, 0.0
    %v1607 = vsel %vm1595, %v1561, 0.0
    %v1608 = vadd.f32 %v1606, %v1607
    %v1609 = vsel %vm1603, %v1555, 0.0
    %v1610 = vadd.f32 %v1608, %v1609
    %vm1611 = vcmp.eq.f32.partialorder %v1545, 8.0
    %v1612 = vsel %vm1611, %v1552, 0.0
    %v1613 = vadd.f32 %v1610, %v1612
    %v1614 = vsel %vm1595, %v1562, 0.0
    %v1615 = vsel %vm1603, %v1561, 0.0
    %v1616 = vadd.f32 %v1614, %v1615
    %v1617 = vsel %vm1611, %v1555, 0.0
    %v1618 = vadd.f32 %v1616, %v1617
    %vm1619 = vcmp.eq.f32.partialorder %v1545, 9.0
    %v1620 = vsel %vm1619, %v1552, 0.0
    %v1621 = vadd.f32 %v1618, %v1620
    %v1622 = vsel %vm1603, %v1562, 0.0
    %v1623 = vsel %vm1611, %v1561, 0.0
    %v1624 = vadd.f32 %v1622, %v1623
    %v1625 = vsel %vm1619, %v1555, 0.0
    %v1626 = vadd.f32 %v1624, %v1625
    %vm1627 = vcmp.eq.f32.partialorder %v1545, 10.0
    %v1628 = vsel %vm1627, %v1552, 0.0
    %v1629 = vadd.f32 %v1626, %v1628
    %v1630 = vpack.c.bf16 %v1573, %v1573
    %v1631 = vpack.c.bf16 %v1581, %v1581
    %v1632 = vpack.c.bf16 %v1589, %v1589
    %v1633 = vpack.c.bf16 %v1597, %v1597
    %v1634 = vpack.c.bf16 %v1605, %v1605
    %v1635 = vpack.c.bf16 %v1613, %v1613
    %v1636 = vpack.c.bf16 %v1621, %v1621
    %v1637 = vpack.c.bf16 %v1629, %v1629
    %v1638 = vld [vmem:[#allocation14] sm:$0xf]
    %v1639 = vld [vmem:[#allocation14 + $0x4] sm:$0xf]
    %v1640 = vld [vmem:[#allocation14 + $0x8] sm:$0xf]
    %v1641 = vld [vmem:[#allocation14 + $0xc] sm:$0xf]
    %v1642 = vld [vmem:[#allocation14 + $0x10] sm:$0xf]
    %v1643 = vld [vmem:[#allocation14 + $0x14] sm:$0xf]
    %v1644 = vld [vmem:[#allocation14 + $0x18] sm:$0xf]
    %v1645 = vld [vmem:[#allocation14 + $0x1c] sm:$0xf]
    %v1646 = vld [vmem:[#allocation14 + $0x20] sm:$0xf]
    %v1647 = vld [vmem:[#allocation14 + $0x24] sm:$0xf]
    %v1648 = vld [vmem:[#allocation14 + $0x28] sm:$0xf]
    %v1649 = vld [vmem:[#allocation14 + $0x2c] sm:$0xf]
    %v1650 = vld [vmem:[#allocation14 + $0x30] sm:$0xf]
    %v1651 = vld [vmem:[#allocation14 + $0x34] sm:$0xf]
    %v1652 = vld [vmem:[#allocation14 + $0x38] sm:$0xf]
    %v1653 = vld [vmem:[#allocation14 + $0x3c] sm:$0xf]
    %v1654 = vld [vmem:[#allocation14 + $0x40] sm:$0xf]
    %v1655 = vld [vmem:[#allocation14 + $0x44] sm:$0xf]
    %v1656 = vld [vmem:[#allocation14 + $0x48] sm:$0xf]
    %v1657 = vld [vmem:[#allocation14 + $0x4c] sm:$0xf]
    %v1658 = vld [vmem:[#allocation14 + $0x50] sm:$0xf]
    %v1659 = vld [vmem:[#allocation14 + $0x54] sm:$0xf]
    %v1660 = vld [vmem:[#allocation14 + $0x58] sm:$0xf]
    %v1661 = vld [vmem:[#allocation14 + $0x5c] sm:$0xf]
    %v1662 = vld [vmem:[#allocation14 + $0x60] sm:$0xf]
    %v1663 = vld [vmem:[#allocation14 + $0x64] sm:$0xf]
    %v1664 = vld [vmem:[#allocation14 + $0x68] sm:$0xf]
    %v1665 = vld [vmem:[#allocation14 + $0x6c] sm:$0xf]
    %v1666 = vld [vmem:[#allocation14 + $0x70] sm:$0xf]
    %v1667 = vld [vmem:[#allocation14 + $0x74] sm:$0xf]
    %v1668 = vld [vmem:[#allocation14 + $0x78] sm:$0xf]
    %v1669 = vld [vmem:[#allocation14 + $0x7c] sm:$0xf]
    %v1670 = vld [vmem:[#allocation14 + $0x80] sm:$0xf]
    %v1671 = vld [vmem:[#allocation14 + $0x84] sm:$0xf]
    %v1672 = vld [vmem:[#allocation14 + $0x88] sm:$0xf]
    %v1673 = vld [vmem:[#allocation14 + $0x8c] sm:$0xf]
    %v1674 = vld [vmem:[#allocation14 + $0x90] sm:$0xf]
    %v1675 = vld [vmem:[#allocation14 + $0x94] sm:$0xf]
    %v1676 = vld [vmem:[#allocation14 + $0x98] sm:$0xf]
    %v1677 = vld [vmem:[#allocation14 + $0x9c] sm:$0xf]
    %v1678 = vld [vmem:[#allocation14 + $0xa0] sm:$0xf]
    %v1679 = vld [vmem:[#allocation14 + $0xa4] sm:$0xf]
    %v1680 = vld [vmem:[#allocation14 + $0xa8] sm:$0xf]
    %v1681 = vld [vmem:[#allocation14 + $0xac] sm:$0xf]
    %v1682 = vld [vmem:[#allocation14 + $0xb0] sm:$0xf]
    %v1683 = vld [vmem:[#allocation14 + $0xb4] sm:$0xf]
    %v1684 = vld [vmem:[#allocation14 + $0xb8] sm:$0xf]
    %v1685 = vld [vmem:[#allocation14 + $0xbc] sm:$0xf]
    %v1686 = vld [vmem:[#allocation14 + $0xc0] sm:$0xf]
    %v1687 = vld [vmem:[#allocation14 + $0xc4] sm:$0xf]
    %v1688 = vld [vmem:[#allocation14 + $0xc8] sm:$0xf]
    %v1689 = vld [vmem:[#allocation14 + $0xcc] sm:$0xf]
    %v1690 = vld [vmem:[#allocation14 + $0xd0] sm:$0xf]
    %v1691 = vld [vmem:[#allocation14 + $0xd4] sm:$0xf]
    %v1692 = vld [vmem:[#allocation14 + $0xd8] sm:$0xf]
    %v1693 = vld [vmem:[#allocation14 + $0xdc] sm:$0xf]
    %v1694 = vld [vmem:[#allocation14 + $0xe0] sm:$0xf]
    %v1695 = vld [vmem:[#allocation14 + $0xe4] sm:$0xf]
    %v1696 = vld [vmem:[#allocation14 + $0xe8] sm:$0xf]
    %v1697 = vld [vmem:[#allocation14 + $0xec] sm:$0xf]
    %v1698 = vld [vmem:[#allocation14 + $0xf0] sm:$0xf]
    %v1699 = vld [vmem:[#allocation14 + $0xf4] sm:$0xf]
    %v1700 = vld [vmem:[#allocation14 + $0xf8] sm:$0xf]
    %v1701 = vld [vmem:[#allocation14 + $0xfc] sm:$0xf]
    %v1702 = vld [vmem:[#allocation14 + $0x100] sm:$0xf]
    %v1703 = vld [vmem:[#allocation14 + $0x104] sm:$0xf]
    %v1704 = vld [vmem:[#allocation14 + $0x108] sm:$0xf]
    %v1705 = vld [vmem:[#allocation14 + $0x10c] sm:$0xf]
    %v1706 = vld [vmem:[#allocation14 + $0x110] sm:$0xf]
    %v1707 = vld [vmem:[#allocation14 + $0x114] sm:$0xf]
    %v1708 = vld [vmem:[#allocation14 + $0x118] sm:$0xf]
    %v1709 = vld [vmem:[#allocation14 + $0x11c] sm:$0xf]
    %v1710 = vld [vmem:[#allocation14 + $0x120] sm:$0xf]
    %v1711 = vld [vmem:[#allocation14 + $0x124] sm:$0xf]
    %v1712 = vld [vmem:[#allocation14 + $0x128] sm:$0xf]
    %v1713 = vld [vmem:[#allocation14 + $0x12c] sm:$0xf]
    %v1714 = vld [vmem:[#allocation14 + $0x130] sm:$0xf]
    %v1715 = vld [vmem:[#allocation14 + $0x134] sm:$0xf]
    %v1716 = vld [vmem:[#allocation14 + $0x138] sm:$0xf]
    %v1717 = vld [vmem:[#allocation14 + $0x13c] sm:$0xf]
    %v1718 = vld [vmem:[#allocation14 + $0x140] sm:$0xf]
    %v1719 = vld [vmem:[#allocation14 + $0x144] sm:$0xf]
    %v1720 = vld [vmem:[#allocation14 + $0x148] sm:$0xf]
    %v1721 = vld [vmem:[#allocation14 + $0x14c] sm:$0xf]
    %v1722 = vld [vmem:[#allocation14 + $0x150] sm:$0xf]
    %v1723 = vld [vmem:[#allocation14 + $0x154] sm:$0xf]
    %v1724 = vld [vmem:[#allocation14 + $0x158] sm:$0xf]
    %v1725 = vld [vmem:[#allocation14 + $0x15c] sm:$0xf]
    %v1726 = vld [vmem:[#allocation14 + $0x160] sm:$0xf]
    %v1727 = vld [vmem:[#allocation14 + $0x164] sm:$0xf]
    %v1728 = vld [vmem:[#allocation14 + $0x168] sm:$0xf]
    %v1729 = vld [vmem:[#allocation14 + $0x16c] sm:$0xf]
    %v1730 = vld [vmem:[#allocation14 + $0x170] sm:$0xf]
    %v1731 = vld [vmem:[#allocation14 + $0x174] sm:$0xf]
    %v1732 = vld [vmem:[#allocation14 + $0x178] sm:$0xf]
    %v1733 = vld [vmem:[#allocation14 + $0x17c] sm:$0xf]
    %v1734 = vld [vmem:[#allocation14 + $0x180] sm:$0xf]
    %v1735 = vld [vmem:[#allocation14 + $0x184] sm:$0xf]
    %v1736 = vld [vmem:[#allocation14 + $0x188] sm:$0xf]
    %v1737 = vld [vmem:[#allocation14 + $0x18c] sm:$0xf]
    %v1738 = vld [vmem:[#allocation14 + $0x190] sm:$0xf]
    %v1739 = vld [vmem:[#allocation14 + $0x194] sm:$0xf]
    %v1740 = vld [vmem:[#allocation14 + $0x198] sm:$0xf]
    %v1741 = vld [vmem:[#allocation14 + $0x19c] sm:$0xf]
    %v1742 = vld [vmem:[#allocation14 + $0x1a0] sm:$0xf]
    %v1743 = vld [vmem:[#allocation14 + $0x1a4] sm:$0xf]
    %v1744 = vld [vmem:[#allocation14 + $0x1a8] sm:$0xf]
    %v1745 = vld [vmem:[#allocation14 + $0x1ac] sm:$0xf]
    %v1746 = vld [vmem:[#allocation14 + $0x1b0] sm:$0xf]
    %v1747 = vld [vmem:[#allocation14 + $0x1b4] sm:$0xf]
    %v1748 = vld [vmem:[#allocation14 + $0x1b8] sm:$0xf]
    %v1749 = vld [vmem:[#allocation14 + $0x1bc] sm:$0xf]
    %v1750 = vld [vmem:[#allocation14 + $0x1c0] sm:$0xf]
    %v1751 = vld [vmem:[#allocation14 + $0x1c4] sm:$0xf]
    %v1752 = vld [vmem:[#allocation14 + $0x1c8] sm:$0xf]
    %v1753 = vld [vmem:[#allocation14 + $0x1cc] sm:$0xf]
    %v1754 = vld [vmem:[#allocation14 + $0x1d0] sm:$0xf]
    %v1755 = vld [vmem:[#allocation14 + $0x1d4] sm:$0xf]
    %v1756 = vld [vmem:[#allocation14 + $0x1d8] sm:$0xf]
    %v1757 = vld [vmem:[#allocation14 + $0x1dc] sm:$0xf]
    %v1758 = vld [vmem:[#allocation14 + $0x1e0] sm:$0xf]
    %v1759 = vld [vmem:[#allocation14 + $0x1e4] sm:$0xf]
    %v1760 = vld [vmem:[#allocation14 + $0x1e8] sm:$0xf]
    %v1761 = vld [vmem:[#allocation14 + $0x1ec] sm:$0xf]
    %v1762 = vld [vmem:[#allocation14 + $0x1f0] sm:$0xf]
    %v1763 = vld [vmem:[#allocation14 + $0x1f4] sm:$0xf]
    %v1764 = vld [vmem:[#allocation14 + $0x1f8] sm:$0xf]
    %v1765 = vld [vmem:[#allocation14 + $0x1fc] sm:$0xf]
    %v1894 = vunpack.c.l.b16 %v1638
    %v1895 = vunpack.c.l.b16 %v1639
    %v1896 = vunpack.c.l.b16 %v1640
    %v1897 = vunpack.c.l.b16 %v1641
    %v1898 = vunpack.c.l.b16 %v1642
    %v1899 = vunpack.c.l.b16 %v1643
    %v1900 = vunpack.c.l.b16 %v1644
    %v1901 = vunpack.c.l.b16 %v1645
    %v1902 = vunpack.c.l.b16 %v1646
    %v1903 = vunpack.c.l.b16 %v1647
    %v1904 = vunpack.c.l.b16 %v1648
    %v1905 = vunpack.c.l.b16 %v1649
    %v1906 = vunpack.c.l.b16 %v1650
    %v1907 = vunpack.c.l.b16 %v1651
    %v1908 = vunpack.c.l.b16 %v1652
    %v1909 = vunpack.c.l.b16 %v1653
    %v1910 = vunpack.c.l.b16 %v1654
    %v1911 = vunpack.c.l.b16 %v1655
    %v1912 = vunpack.c.l.b16 %v1656
    %v1913 = vunpack.c.l.b16 %v1657
    %v1914 = vunpack.c.l.b16 %v1658
    %v1915 = vunpack.c.l.b16 %v1659
    %v1916 = vunpack.c.l.b16 %v1660
    %v1917 = vunpack.c.l.b16 %v1661
    %v1918 = vunpack.c.l.b16 %v1662
    %v1919 = vunpack.c.l.b16 %v1663
    %v1920 = vunpack.c.l.b16 %v1664
    %v1921 = vunpack.c.l.b16 %v1665
    %v1922 = vunpack.c.l.b16 %v1666
    %v1923 = vunpack.c.l.b16 %v1667
    %v1924 = vunpack.c.l.b16 %v1668
    %v1925 = vunpack.c.l.b16 %v1669
    %v1926 = vunpack.c.l.b16 %v1670
    %v1927 = vunpack.c.l.b16 %v1671
    %v1928 = vunpack.c.l.b16 %v1672
    %v1929 = vunpack.c.l.b16 %v1673
    %v1930 = vunpack.c.l.b16 %v1674
    %v1931 = vunpack.c.l.b16 %v1675
    %v1932 = vunpack.c.l.b16 %v1676
    %v1933 = vunpack.c.l.b16 %v1677
    %v1934 = vunpack.c.l.b16 %v1678
    %v1935 = vunpack.c.l.b16 %v1679
    %v1936 = vunpack.c.l.b16 %v1680
    %v1937 = vunpack.c.l.b16 %v1681
    %v1938 = vunpack.c.l.b16 %v1682
    %v1939 = vunpack.c.l.b16 %v1683
    %v1940 = vunpack.c.l.b16 %v1684
    %v1941 = vunpack.c.l.b16 %v1685
    %v1942 = vunpack.c.l.b16 %v1686
    %v1943 = vunpack.c.l.b16 %v1687
    %v1944 = vunpack.c.l.b16 %v1688
    %v1945 = vunpack.c.l.b16 %v1689
    %v1946 = vunpack.c.l.b16 %v1690
    %v1947 = vunpack.c.l.b16 %v1691
    %v1948 = vunpack.c.l.b16 %v1692
    %v1949 = vunpack.c.l.b16 %v1693
    %v1950 = vunpack.c.l.b16 %v1694
    %v1951 = vunpack.c.l.b16 %v1695
    %v1952 = vunpack.c.l.b16 %v1696
    %v1953 = vunpack.c.l.b16 %v1697
    %v1954 = vunpack.c.l.b16 %v1698
    %v1955 = vunpack.c.l.b16 %v1699
    %v1956 = vunpack.c.l.b16 %v1700
    %v1957 = vunpack.c.l.b16 %v1701
    %v1958 = vunpack.c.l.b16 %v1702
    %v1959 = vunpack.c.l.b16 %v1703
    %v1960 = vunpack.c.l.b16 %v1704
    %v1961 = vunpack.c.l.b16 %v1705
    %v1962 = vunpack.c.l.b16 %v1706
    %v1963 = vunpack.c.l.b16 %v1707
    %v1964 = vunpack.c.l.b16 %v1708
    %v1965 = vunpack.c.l.b16 %v1709
    %v1966 = vunpack.c.l.b16 %v1710
    %v1967 = vunpack.c.l.b16 %v1711
    %v1968 = vunpack.c.l.b16 %v1712
    %v1969 = vunpack.c.l.b16 %v1713
    %v1970 = vunpack.c.l.b16 %v1714
    %v1971 = vunpack.c.l.b16 %v1715
    %v1972 = vunpack.c.l.b16 %v1716
    %v1973 = vunpack.c.l.b16 %v1717
    %v1974 = vunpack.c.l.b16 %v1718
    %v1975 = vunpack.c.l.b16 %v1719
    %v1976 = vunpack.c.l.b16 %v1720
    %v1977 = vunpack.c.l.b16 %v1721
    %v1978 = vunpack.c.l.b16 %v1722
    %v1979 = vunpack.c.l.b16 %v1723
    %v1980 = vunpack.c.l.b16 %v1724
    %v1981 = vunpack.c.l.b16 %v1725
    %v1982 = vunpack.c.l.b16 %v1726
    %v1983 = vunpack.c.l.b16 %v1727
    %v1984 = vunpack.c.l.b16 %v1728
    %v1985 = vunpack.c.l.b16 %v1729
    %v1986 = vunpack.c.l.b16 %v1730
    %v1987 = vunpack.c.l.b16 %v1731
    %v1988 = vunpack.c.l.b16 %v1732
    %v1989 = vunpack.c.l.b16 %v1733
    %v1990 = vunpack.c.l.b16 %v1734
    %v1991 = vunpack.c.l.b16 %v1735
    %v1992 = vunpack.c.l.b16 %v1736
    %v1993 = vunpack.c.l.b16 %v1737
    %v1994 = vunpack.c.l.b16 %v1738
    %v1995 = vunpack.c.l.b16 %v1739
    %v1996 = vunpack.c.l.b16 %v1740
    %v1997 = vunpack.c.l.b16 %v1741
    %v1998 = vunpack.c.l.b16 %v1742
    %v1999 = vunpack.c.l.b16 %v1743
    %v2000 = vunpack.c.l.b16 %v1744
    %v2001 = vunpack.c.l.b16 %v1745
    %v2002 = vunpack.c.l.b16 %v1746
    %v2003 = vunpack.c.l.b16 %v1747
    %v2004 = vunpack.c.l.b16 %v1748
    %v2005 = vunpack.c.l.b16 %v1749
    %v2006 = vunpack.c.l.b16 %v1750
    %v2007 = vunpack.c.l.b16 %v1751
    %v2008 = vunpack.c.l.b16 %v1752
    %v2009 = vunpack.c.l.b16 %v1753
    %v2010 = vunpack.c.l.b16 %v1754
    %v2011 = vunpack.c.l.b16 %v1755
    %v2012 = vunpack.c.l.b16 %v1756
    %v2013 = vunpack.c.l.b16 %v1757
    %v2014 = vunpack.c.l.b16 %v1758
    %v2015 = vunpack.c.l.b16 %v1759
    %v2016 = vunpack.c.l.b16 %v1760
    %v2017 = vunpack.c.l.b16 %v1761
    %v2018 = vunpack.c.l.b16 %v1762
    %v2019 = vunpack.c.l.b16 %v1763
    %v2020 = vunpack.c.l.b16 %v1764
    %v2021 = vunpack.c.l.b16 %v1765
    %v2022 = vpack.c.b16 %v1895, %v1894
    %v2023 = vpack.c.b16 %v1897, %v1896
    %v2024 = vpack.c.b16 %v1899, %v1898
    %v2025 = vpack.c.b16 %v1901, %v1900
    %v2026 = vpack.c.b16 %v1903, %v1902
    %v2027 = vpack.c.b16 %v1905, %v1904
    %v2028 = vpack.c.b16 %v1907, %v1906
    %v2029 = vpack.c.b16 %v1909, %v1908
    %v2030 = vpack.c.b16 %v1911, %v1910
    %v2031 = vpack.c.b16 %v1913, %v1912
    %v2032 = vpack.c.b16 %v1915, %v1914
    %v2033 = vpack.c.b16 %v1917, %v1916
    %v2034 = vpack.c.b16 %v1919, %v1918
    %v2035 = vpack.c.b16 %v1921, %v1920
    %v2036 = vpack.c.b16 %v1923, %v1922
    %v2037 = vpack.c.b16 %v1925, %v1924
    %v2038 = vpack.c.b16 %v1927, %v1926
    %v2039 = vpack.c.b16 %v1929, %v1928
    %v2040 = vpack.c.b16 %v1931, %v1930
    %v2041 = vpack.c.b16 %v1933, %v1932
    %v2042 = vpack.c.b16 %v1935, %v1934
    %v2043 = vpack.c.b16 %v1937, %v1936
    %v2044 = vpack.c.b16 %v1939, %v1938
    %v2045 = vpack.c.b16 %v1941, %v1940
    %v2046 = vpack.c.b16 %v1943, %v1942
    %v2047 = vpack.c.b16 %v1945, %v1944
    %v2048 = vpack.c.b16 %v1947, %v1946
    %v2049 = vpack.c.b16 %v1949, %v1948
    %v2050 = vpack.c.b16 %v1951, %v1950
    %v2051 = vpack.c.b16 %v1953, %v1952
    %v2052 = vpack.c.b16 %v1955, %v1954
    %v2053 = vpack.c.b16 %v1957, %v1956
    %v2054 = vpack.c.b16 %v1959, %v1958
    %v2055 = vpack.c.b16 %v1961, %v1960
    %v2056 = vpack.c.b16 %v1963, %v1962
    %v2057 = vpack.c.b16 %v1965, %v1964
    %v2058 = vpack.c.b16 %v1967, %v1966
    %v2059 = vpack.c.b16 %v1969, %v1968
    %v2060 = vpack.c.b16 %v1971, %v1970
    %v2061 = vpack.c.b16 %v1973, %v1972
    %v2062 = vpack.c.b16 %v1975, %v1974
    %v2063 = vpack.c.b16 %v1977, %v1976
    %v2064 = vpack.c.b16 %v1979, %v1978
    %v2065 = vpack.c.b16 %v1981, %v1980
    %v2066 = vpack.c.b16 %v1983, %v1982
    %v2067 = vpack.c.b16 %v1985, %v1984
    %v2068 = vpack.c.b16 %v1987, %v1986
    %v2069 = vpack.c.b16 %v1989, %v1988
    %v2070 = vpack.c.b16 %v1991, %v1990
    %v2071 = vpack.c.b16 %v1993, %v1992
    %v2072 = vpack.c.b16 %v1995, %v1994
    %v2073 = vpack.c.b16 %v1997, %v1996
    %v2074 = vpack.c.b16 %v1999, %v1998
    %v2075 = vpack.c.b16 %v2001, %v2000
    %v2076 = vpack.c.b16 %v2003, %v2002
    %v2077 = vpack.c.b16 %v2005, %v2004
    %v2078 = vpack.c.b16 %v2007, %v2006
    %v2079 = vpack.c.b16 %v2009, %v2008
    %v2080 = vpack.c.b16 %v2011, %v2010
    %v2081 = vpack.c.b16 %v2013, %v2012
    %v2082 = vpack.c.b16 %v2015, %v2014
    %v2083 = vpack.c.b16 %v2017, %v2016
    %v2084 = vpack.c.b16 %v2019, %v2018
    %v2085 = vpack.c.b16 %v2021, %v2020
    %2150 = vmatpush.bf16.msra.mxu0 %v2029
    %2151 = vmatpush.bf16.msra.mxu0 %v2028
    %2152 = vmatpush.bf16.msra.mxu0 %v2027
    %2153 = vmatpush.bf16.msra.mxu0 %v2026
    %2154 = vmatpush.bf16.msra.mxu0 %v2025
    %2155 = vmatpush.bf16.msra.mxu0 %v2024
    %2156 = vmatpush.bf16.msra.mxu0 %v2023
    %2157 = vmatpush.bf16.msra.mxu0 %v2022
    %2158 = vmatmul.bf16.gmra.mxu0 %v1630
    %v2159 = vpop.f32.mrf.mxu0
    %v2160 = vadd.f32 0.0, %v2159
    %v2161 = vpop.f32.mrf.mxu0
    %2162 = vdwg.mxu0
    %2163 = vmatpush.bf16.msra.mxu0 %v2037
    %2164 = vmatpush.bf16.msra.mxu0 %v2036
    %2165 = vmatpush.bf16.msra.mxu0 %v2035
    %2166 = vmatpush.bf16.msra.mxu0 %v2034
    %2167 = vmatpush.bf16.msra.mxu0 %v2033
    %2168 = vmatpush.bf16.msra.mxu0 %v2032
    %2169 = vmatpush.bf16.msra.mxu0 %v2031
    %2170 = vmatpush.bf16.msra.mxu0 %v2030
    %2171 = vmatmul.bf16.gmra.mxu0 %v1631
    %v2172 = vpop.f32.mrf.mxu0
    %v2173 = vadd.f32 %v2160, %v2172
    %v2174 = vpop.f32.mrf.mxu0
    %2175 = vdwg.mxu0
    %2176 = vmatpush.bf16.msra.mxu0 %v2045
    %2177 = vmatpush.bf16.msra.mxu0 %v2044
    %2178 = vmatpush.bf16.msra.mxu0 %v2043
    %2179 = vmatpush.bf16.msra.mxu0 %v2042
    %2180 = vmatpush.bf16.msra.mxu0 %v2041
    %2181 = vmatpush.bf16.msra.mxu0 %v2040
    %2182 = vmatpush.bf16.msra.mxu0 %v2039
    %2183 = vmatpush.bf16.msra.mxu0 %v2038
    %2184 = vmatmul.bf16.gmra.mxu0 %v1632
    %v2185 = vpop.f32.mrf.mxu0
    %v2186 = vadd.f32 %v2173, %v2185
    %v2187 = vpop.f32.mrf.mxu0
    %2188 = vdwg.mxu0
    %2189 = vmatpush.bf16.msra.mxu0 %v2053
    %2190 = vmatpush.bf16.msra.mxu0 %v2052
    %2191 = vmatpush.bf16.msra.mxu0 %v2051
    %2192 = vmatpush.bf16.msra.mxu0 %v2050
    %2193 = vmatpush.bf16.msra.mxu0 %v2049
    %2194 = vmatpush.bf16.msra.mxu0 %v2048
    %2195 = vmatpush.bf16.msra.mxu0 %v2047
    %2196 = vmatpush.bf16.msra.mxu0 %v2046
    %2197 = vmatmul.bf16.gmra.mxu0 %v1633
    %v2198 = vpop.f32.mrf.mxu0
    %v2199 = vadd.f32 %v2186, %v2198
    %v2200 = vpop.f32.mrf.mxu0
    %2201 = vdwg.mxu0
    %2202 = vmatpush.bf16.msra.mxu0 %v2061
    %2203 = vmatpush.bf16.msra.mxu0 %v2060
    %2204 = vmatpush.bf16.msra.mxu0 %v2059
    %2205 = vmatpush.bf16.msra.mxu0 %v2058
    %2206 = vmatpush.bf16.msra.mxu0 %v2057
    %2207 = vmatpush.bf16.msra.mxu0 %v2056
    %2208 = vmatpush.bf16.msra.mxu0 %v2055
    %2209 = vmatpush.bf16.msra.mxu0 %v2054
    %2210 = vmatmul.bf16.gmra.mxu0 %v1634
    %v2211 = vpop.f32.mrf.mxu0
    %v2212 = vadd.f32 %v2199, %v2211
    %v2213 = vpop.f32.mrf.mxu0
    %2214 = vdwg.mxu0
    %2215 = vmatpush.bf16.msra.mxu0 %v2069
    %2216 = vmatpush.bf16.msra.mxu0 %v2068
    %2217 = vmatpush.bf16.msra.mxu0 %v2067
    %2218 = vmatpush.bf16.msra.mxu0 %v2066
    %2219 = vmatpush.bf16.msra.mxu0 %v2065
    %2220 = vmatpush.bf16.msra.mxu0 %v2064
    %2221 = vmatpush.bf16.msra.mxu0 %v2063
    %2222 = vmatpush.bf16.msra.mxu0 %v2062
    %2223 = vmatmul.bf16.gmra.mxu0 %v1635
    %v2224 = vpop.f32.mrf.mxu0
    %v2225 = vadd.f32 %v2212, %v2224
    %v2226 = vpop.f32.mrf.mxu0
    %2227 = vdwg.mxu0
    %2228 = vmatpush.bf16.msra.mxu0 %v2077
    %2229 = vmatpush.bf16.msra.mxu0 %v2076
    %2230 = vmatpush.bf16.msra.mxu0 %v2075
    %2231 = vmatpush.bf16.msra.mxu0 %v2074
    %2232 = vmatpush.bf16.msra.mxu0 %v2073
    %2233 = vmatpush.bf16.msra.mxu0 %v2072
    %2234 = vmatpush.bf16.msra.mxu0 %v2071
    %2235 = vmatpush.bf16.msra.mxu0 %v2070
    %2236 = vmatmul.bf16.gmra.mxu0 %v1636
    %v2237 = vpop.f32.mrf.mxu0
    %v2238 = vadd.f32 %v2225, %v2237
    %v2239 = vpop.f32.mrf.mxu0
    %2240 = vdwg.mxu0
    %2241 = vmatpush.bf16.msra.mxu0 %v2085
    %2242 = vmatpush.bf16.msra.mxu0 %v2084
    %2243 = vmatpush.bf16.msra.mxu0 %v2083
    %2244 = vmatpush.bf16.msra.mxu0 %v2082
    %2245 = vmatpush.bf16.msra.mxu0 %v2081
    %2246 = vmatpush.bf16.msra.mxu0 %v2080
    %2247 = vmatpush.bf16.msra.mxu0 %v2079
    %2248 = vmatpush.bf16.msra.mxu0 %v2078
    %2249 = vmatmul.bf16.gmra.mxu0 %v1637
    %v2250 = vpop.f32.mrf.mxu0
    %v2251 = vadd.f32 %v2238, %v2250
    %v2252 = vpop.f32.mrf.mxu0
    %2253 = vdwg.mxu0
    %v2270 = vunpack.c.l.b16 %v1527
    %v2271 = vunpack.c.l.b16 %v1528
    %v2272 = vunpack.c.l.b16 %v1529
    %v2273 = vunpack.c.l.b16 %v1530
    %v2274 = vunpack.c.l.b16 %v1531
    %v2275 = vunpack.c.l.b16 %v1532
    %v2276 = vunpack.c.l.b16 %v1533
    %v2277 = vunpack.c.l.b16 %v1534
    %v2278 = vunpack.c.l.b16 %v1535
    %v2279 = vunpack.c.l.b16 %v1536
    %v2280 = vunpack.c.l.b16 %v1537
    %v2281 = vunpack.c.l.b16 %v1538
    %v2282 = vunpack.c.l.b16 %v1539
    %v2283 = vunpack.c.l.b16 %v1540
    %v2284 = vunpack.c.l.b16 %v1541
    %v2285 = vunpack.c.l.b16 %v1542
    %v2286 = vpack.c.b16 %v2271, %v2270
    %v2287 = vpack.c.b16 %v2273, %v2272
    %v2288 = vpack.c.b16 %v2275, %v2274
    %v2289 = vpack.c.b16 %v2277, %v2276
    %v2290 = vpack.c.b16 %v2279, %v2278
    %v2291 = vpack.c.b16 %v2281, %v2280
    %v2292 = vpack.c.b16 %v2283, %v2282
    %v2293 = vpack.c.b16 %v2285, %v2284
    %2302 = vmatpush.bf16.msra.mxu0 %v2293
    %2303 = vmatpush.bf16.msra.mxu0 %v2292
    %2304 = vmatpush.bf16.msra.mxu0 %v2291
    %2305 = vmatpush.bf16.msra.mxu0 %v2290
    %2306 = vmatpush.bf16.msra.mxu0 %v2289
    %2307 = vmatpush.bf16.msra.mxu0 %v2288
    %2308 = vmatpush.bf16.msra.mxu0 %v2287
    %2309 = vmatpush.bf16.msra.mxu0 %v2286
    %2310 = vmatmul.bf16.gmra.mxu0 %v1526
    %v2311 = vpop.f32.mrf.mxu0
    %v2312 = vadd.f32 %v2251, %v2311
    %v2313 = vpop.f32.mrf.mxu0
    %2314 = vdwg.mxu0
    %2315 = vst [vmem:[#allocation16] sm:$0xff] %v2312
    // Predicated region
    $region78: #{tpu_custom_call.1} parent=1 // pred_check
      _
    $region79: #{tpu_custom_call.1} parent=1 // pred_check_branch
      %2317 = sbr.rel (0) target = $region81
    $region80: #{tpu_custom_call.1} parent=1 // pred_region
      %2319 = vsyncadd [#allocation4], 0
      %s2321 = sshll.u32 [#allocation16], 4
      %s2322 = int_to_ptr.vmem [resolvable:$true] %s2321
      %s2323 = sshll.u32 %s11, 4
      %s2324 = int_to_ptr.hbm [resolvable:$true] %s2323
      %2326 = dma.vmem_to_hbm [thread:$0]  %s2322, 128, %s2324, [#allocation4]
    $region81: #{tpu_custom_call.1} parent=1 // pred_fallthru
      _
    // Predicated region
    $region82: #{tpu_custom_call.1} parent=1 // pred_check
      _
    $region83: #{tpu_custom_call.1} parent=1 // pred_check_branch
      %2328 = sbr.rel (0) target = $region85
    $region84: #{tpu_custom_call.1} parent=1 // pred_region
      %2330 = dma.done [#allocation4], 128
    $region85: #{tpu_custom_call.1} parent=1 // pred_fallthru
      _
    %2331 = vsyncpa [#allocation3], 1
    %2332 = vsyncpa [#allocation6], 1
    %2333 = vsyncpa [#allocation9], 1
    %2334 = vsyncpa [#allocation12], 1
    %2335 = vsyncpa [#allocation15], 1
    %2336 = vsyncpa [#allocation4], 1

</llo_original>
